<compile_context>
chip_gen: v7x
topology: tpu7x:2x2x1
jax: 0.10.0
libtpu: 0.0.40
codegen_flags: <defaults>
</compile_context>

<pallas_src>
import math
import functools
import jax
import jax.numpy as jnp
from jax.experimental import pallas as pl
from jax.experimental.pallas import tpu as pltpu

_CHUNK = 128  # MXU-width row chunk: 128 // N graphs per chunk


def _graph_embedding_kernel(adj_ref, x_ref, mask_ref, wg_ref, rhs_ref, bias_ref,
                            out_ref, *, n, gpc, n_chunks, hidden):
    chunk_rows = gpc * n  # 128

    def chunk_body(c, carry):
        r0 = pl.multiple_of(c * chunk_rows, chunk_rows)
        g0 = pl.multiple_of(c * gpc, gpc)

        x_c = x_ref[pl.ds(r0, chunk_rows), :]        # (128, F)  bf16
        adj_c = adj_ref[pl.ds(r0, chunk_rows), :]    # (128, 128) bf16 block-diag, mask folded
        m_c = mask_ref[pl.ds(r0, chunk_rows), :]     # (128, 1)   f32

        # GraphConvolution: relu(adj @ (x @ W_gnn)), f32 accumulation throughout
        support = jnp.dot(x_c, wg_ref[...], preferred_element_type=jnp.float32)   # (128, H)
        h0 = jnp.dot(adj_c.astype(jnp.float32), support,
                     preferred_element_type=jnp.float32)                           # (128, H)
        h0 = jnp.maximum(h0, 0.0)

        # fused [W_ln | w_att] matmul + fused bias row
        fused = jnp.dot(h0, rhs_ref[...].astype(jnp.float32),
                        preferred_element_type=jnp.float32) + bias_ref[...]        # (128, 64)
        h1 = jnp.maximum(fused[:, :hidden], 0.0)                                   # (128, H)
        att_logit = fused[:, hidden:hidden + 1]                                    # (128, 1)
        soft_att = pl.reciprocal(1.0 + jnp.exp(-att_logit), approx=True)           # EUP sigmoid

        # gate + mask, pooled graph embedding: sum_n * max_n (per graph)
        y = (soft_att * m_c) * h1                                                  # (128, H)
        y3 = y.reshape(gpc, n, hidden)                                             # (gpc, N, H)
        ge = jnp.sum(y3, axis=1) * jnp.max(y3, axis=1)                             # (gpc, H)

        out_ref[pl.ds(g0, gpc), :] = ge.astype(out_ref.dtype)
        return carry

    jax.lax.fori_loop(0, n_chunks, chunk_body, 0, unroll=True)


def graph_embedding_forward(x, adj, mask, w_gnn, w_att, b_att, w_ln, b_ln, *, bt=128):
    B, N, F = x.shape
    H = w_gnn.shape[1]
    assert _CHUNK % N == 0, "node count must divide 128 for the block-diagonal MXU chunking"
    gpc = _CHUNK // N                      # graphs per 128-row chunk

    # bt graphs per grid step, a multiple of gpc; pad batch up to a multiple of bt
    bt = max(gpc, (int(bt) // gpc) * gpc)
    nb = -(-B // bt)
    b_pad = nb * bt
    if b_pad != B:
        pad = b_pad - B
        x = jnp.pad(x, ((0, pad), (0, 0), (0, 0)))
        adj = jnp.pad(adj, ((0, pad), (0, 0), (0, 0)))
        mask = jnp.pad(mask, ((0, pad), (0, 0), (0, 0)))
    n_chunks = bt // gpc

    mask_f = mask.astype(jnp.float32)

    # Fold the row mask into the adjacency (mask in {0,1}, relu(0)=0 -> identical h0),
    # then expand to a block-diagonal (B_pad*N, 128) slab in the wrapper (free XLA plumbing).
    adj_m = adj.astype(jnp.float32) * mask_f                             # (B_pad, N, N)
    adj4 = adj_m.reshape(b_pad // gpc, gpc, N, N)
    eye = jnp.eye(gpc, dtype=jnp.float32)
    adj_bd = (adj4[:, :, :, None, :] * eye[None, :, None, :, None]
              ).reshape(b_pad * N, gpc * N).astype(jnp.bfloat16)         # (B_pad*N, 128)

    x_flat = x.astype(jnp.bfloat16).reshape(b_pad * N, F)                # (B_pad*N, F)
    mask_flat = mask_f.reshape(b_pad * N, 1)                             # (B_pad*N, 1)

    # fused rhs = [W_ln | w_att | zero-pad]  (H, rhs_w), rhs_w a multiple of 64
    rhs_w = -(-(H + 1) // 64) * 64
    rhs = jnp.zeros((H, rhs_w), jnp.float32)
    rhs = rhs.at[:, :H].set(w_ln.astype(jnp.float32))
    rhs = rhs.at[:, H].set(w_att.reshape(H).astype(jnp.float32))
    rhs_bf = rhs.astype(jnp.bfloat16)
    bias = jnp.zeros((1, rhs_w), jnp.float32)
    bias = bias.at[0, :H].set(b_ln.reshape(H).astype(jnp.float32))
    bias = bias.at[0, H].set(b_att.reshape(()).astype(jnp.float32))

    wg_bf = w_gnn.astype(jnp.bfloat16)

    kernel = functools.partial(_graph_embedding_kernel,
                               n=N, gpc=gpc, n_chunks=n_chunks, hidden=H)

    out = pl.pallas_call(
        kernel,
        out_shape=jax.ShapeDtypeStruct((b_pad, H), jnp.float32),
        grid_spec=pltpu.PrefetchScalarGridSpec(
            num_scalar_prefetch=0,
            grid=(nb,),
            in_specs=[
                pl.BlockSpec((bt * N, gpc * N), lambda g: (g, 0)),   # block-diag adjacency
                pl.BlockSpec((bt * N, F), lambda g: (g, 0)),         # x (flattened)
                pl.BlockSpec((bt * N, 1), lambda g: (g, 0)),         # node mask
                pl.BlockSpec((F, H), lambda g: (0, 0)),              # W_gnn (grid-invariant)
                pl.BlockSpec((H, rhs_w), lambda g: (0, 0)),          # [W_ln | w_att]
                pl.BlockSpec((1, rhs_w), lambda g: (0, 0)),          # [b_ln | b_att]
            ],
            out_specs=pl.BlockSpec((bt, H), lambda g: (g, 0)),
        ),
        compiler_params=pltpu.CompilerParams(
            dimension_semantics=("parallel",),
        ),
    )(adj_bd, x_flat, mask_flat, wg_bf, rhs_bf, bias)

    # grid-invariant sinusoidal positional embedding (seq_len==1, position 0) added in XLA
    pos = (jnp.arange(H) % 2).astype(jnp.float32)[None, :]
    return out[:B] + pos


def _reference(x, adj, mask, w_gnn, w_att, b_att, w_ln, b_ln):
    h0 = jnp.maximum(
        jnp.einsum('bnm,bmh->bnh', adj, jnp.einsum('bnf,fh->bnh', x, w_gnn)), 0.0) * mask
    att = jax.nn.sigmoid(jnp.einsum('bnh,hk->bnk', h0, w_att) + b_att)
    h1 = jnp.maximum(jnp.einsum('bnh,hk->bnk', h0, w_ln) + b_ln, 0.0)
    y = att * h1 * mask
    ge = jnp.sum(y, axis=1) * jnp.max(y, axis=1)
    H = w_gnn.shape[1]
    pos = (jnp.arange(H) % 2).astype(jnp.float32)[None, :]
    return ge + pos


def _bf16_round(a):
    return a.astype(jnp.bfloat16).astype(jnp.float32)


if __name__ == "__main__":
    B, N, F, H = 64, 8, 16, 32
    key = jax.random.PRNGKey(0)
    k_x, k_adj, k_mask, k_wg, k_wa, k_ba, k_wl, k_bl = jax.random.split(key, 8)

    x = jax.random.normal(k_x, (B, N, F), dtype=jnp.float32)
    adj = jax.random.uniform(k_adj, (B, N, N), dtype=jnp.float32)
    mask = (jax.random.uniform(k_mask, (B, N, 1)) > 0.25).astype(jnp.float32)

    # GraphConvolution weight: uniform(-stdv, stdv), stdv = sqrt(6 / (F + H))
    stdv = math.sqrt(6.0 / (F + H))
    w_gnn = jax.random.uniform(k_wg, (F, H), minval=-stdv, maxval=stdv, dtype=jnp.float32)

    # Linear layers (deterministic uniform init, PyTorch-default-style bounds)
    bound = 1.0 / math.sqrt(H)
    w_att = jax.random.uniform(k_wa, (H, 1), minval=-bound, maxval=bound, dtype=jnp.float32)
    b_att = jax.random.uniform(k_ba, (1, 1), minval=-bound, maxval=bound, dtype=jnp.float32)
    w_ln = jax.random.uniform(k_wl, (H, H), minval=-bound, maxval=bound, dtype=jnp.float32)
    b_ln = jax.random.uniform(k_bl, (1, H), minval=-bound, maxval=bound, dtype=jnp.float32)

    # bt=32 -> grid of 2 steps (feeds both v7x TensorCores), 2 x 128-row chunks per step
    out = graph_embedding_forward(x, adj, mask, w_gnn, w_att, b_att, w_ln, b_ln, bt=32)
    out = jax.block_until_ready(out)

    # reference in f32 on bf16-rounded data/weights (kernel uses bf16 inputs, f32 accumulation)
    ref = _reference(_bf16_round(x), _bf16_round(adj), mask,
                     _bf16_round(w_gnn), _bf16_round(w_att), b_att,
                     _bf16_round(w_ln), b_ln)

    assert out.shape == (B, H)
    assert jnp.allclose(out, ref, rtol=2e-2, atol=2e-2), "mismatch vs JAX reference"

    print("KERNEL_OK")
</pallas_src>

<mosaic_0001>
module attributes {stable_mosaic.version = 11 : i64} {
  func.func @_graph_embedding_kernel(%arg0: i32, %arg1: memref<256x128xbf16, #tpu.memory_space<vmem>>, %arg2: memref<256x16xbf16, #tpu.memory_space<vmem>>, %arg3: memref<256x1xf32, #tpu.memory_space<vmem>>, %arg4: memref<16x32xbf16, #tpu.memory_space<vmem>>, %arg5: memref<32x64xbf16, #tpu.memory_space<vmem>>, %arg6: memref<1x64xf32, #tpu.memory_space<vmem>>, %arg7: memref<32x32xf32, #tpu.memory_space<vmem>>) attributes {dimension_semantics = [#tpu.dimension_semantics<parallel>], iteration_bounds = array<i64: 2>, scalar_prefetch = 0 : i64, scratch_operands = 0 : i64, tpu.core_type = #tpu.core_type<tc>, window_params = [{transform_indices = @transform_0, window_bounds = array<i64: 256, 128>}, {transform_indices = @transform_1, window_bounds = array<i64: 256, 16>}, {transform_indices = @transform_2, window_bounds = array<i64: 256, 1>}, {pipeline_mode = #tpu.pipeline_mode<synchronous>, transform_indices = @transform_3, window_bounds = array<i64: 16, 32>}, {pipeline_mode = #tpu.pipeline_mode<synchronous>, transform_indices = @transform_4, window_bounds = array<i64: 32, 64>}, {pipeline_mode = #tpu.pipeline_mode<synchronous>, transform_indices = @transform_5, window_bounds = array<i64: 1, 64>}, {transform_indices = @transform_6, window_bounds = array<i64: 32, 32>}]} {
    %c0_i32 = arith.constant 0 : i32
    %c128_i32 = arith.constant 128 : i32
    %0 = arith.muli %c0_i32, %c128_i32 : i32
    %1 = tpu.assume_multiple %0, 128 : i32
    %c16_i32 = arith.constant 16 : i32
    %2 = arith.muli %c0_i32, %c16_i32 : i32
    %3 = tpu.assume_multiple %2, 16 : i32
    %4 = arith.index_cast %1 : i32 to index
    %c0 = arith.constant 0 : index
    %5 = vector.load %arg2[%4, %c0] : memref<256x16xbf16, #tpu.memory_space<vmem>>, vector<128x16xbf16>
    %6 = arith.index_cast %1 : i32 to index
    %c0_0 = arith.constant 0 : index
    %7 = vector.load %arg1[%6, %c0_0] : memref<256x128xbf16, #tpu.memory_space<vmem>>, vector<128x128xbf16>
    %8 = arith.index_cast %1 : i32 to index
    %c0_1 = arith.constant 0 : index
    %9 = vector.load %arg3[%8, %c0_1] : memref<256x1xf32, #tpu.memory_space<vmem>>, vector<128x1xf32>
    %c0_2 = arith.constant 0 : index
    %c0_3 = arith.constant 0 : index
    %10 = vector.load %arg4[%c0_2, %c0_3] : memref<16x32xbf16, #tpu.memory_space<vmem>>, vector<16x32xbf16>
    %cst = arith.constant dense<0.000000e+00> : vector<128x32xf32>
    %11 = tpu.matmul %5, %10, %cst {dimension_numbers = #tpu.dot_dimension_numbers<[1], [0], [0], [1], [0, 0, 1, 1], [], []>} : vector<128x16xbf16>, vector<16x32xbf16>, vector<128x32xf32> -> vector<128x32xf32>
    %12 = arith.extf %7 : vector<128x128xbf16> to vector<128x128xf32>
    %cst_4 = arith.constant dense<0.000000e+00> : vector<128x32xf32>
    %13 = tpu.matmul %12, %11, %cst_4 {dimension_numbers = #tpu.dot_dimension_numbers<[1], [0], [0], [1], [0, 0, 1, 1], [], []>} : vector<128x128xf32>, vector<128x32xf32>, vector<128x32xf32> -> vector<128x32xf32>
    %cst_5 = arith.constant 0.000000e+00 : f32
    %14 = vector.broadcast %cst_5 : f32 to vector<128x32xf32>
    %15 = arith.maximumf %13, %14 : vector<128x32xf32>
    %c0_6 = arith.constant 0 : index
    %c0_7 = arith.constant 0 : index
    %16 = vector.load %arg5[%c0_6, %c0_7] : memref<32x64xbf16, #tpu.memory_space<vmem>>, vector<32x64xbf16>
    %17 = arith.extf %16 : vector<32x64xbf16> to vector<32x64xf32>
    %cst_8 = arith.constant dense<0.000000e+00> : vector<128x64xf32>
    %18 = tpu.matmul %15, %17, %cst_8 {dimension_numbers = #tpu.dot_dimension_numbers<[1], [0], [0], [1], [0, 0, 1, 1], [], []>} : vector<128x32xf32>, vector<32x64xf32>, vector<128x64xf32> -> vector<128x64xf32>
    %c0_9 = arith.constant 0 : index
    %c0_10 = arith.constant 0 : index
    %19 = vector.load %arg6[%c0_9, %c0_10] : memref<1x64xf32, #tpu.memory_space<vmem>>, vector<1x64xf32>
    %20 = vector.broadcast %19 : vector<1x64xf32> to vector<128x64xf32>
    %21 = arith.addf %18, %20 : vector<128x64xf32>
    %22 = vector.extract_strided_slice %21 {offsets = [0, 0], sizes = [128, 32], strides = [1, 1]} : vector<128x64xf32> to vector<128x32xf32>
    %cst_11 = arith.constant 0.000000e+00 : f32
    %23 = vector.broadcast %cst_11 : f32 to vector<128x32xf32>
    %24 = arith.maximumf %22, %23 : vector<128x32xf32>
    %25 = vector.extract_strided_slice %21 {offsets = [0, 32], sizes = [128, 1], strides = [1, 1]} : vector<128x64xf32> to vector<128x1xf32>
    %cst_12 = arith.constant 0.000000e+00 : f32
    %26 = vector.broadcast %cst_12 : f32 to vector<128x1xf32>
    %27 = arith.subf %26, %25 : vector<128x1xf32>
    %28 = math.exp %27 : vector<128x1xf32>
    %cst_13 = arith.constant 1.000000e+00 : f32
    %29 = vector.broadcast %cst_13 : f32 to vector<128x1xf32>
    %30 = arith.addf %29, %28 : vector<128x1xf32>
    %31 = tpu.reciprocal %30 {approx = true} : vector<128x1xf32> -> vector<128x1xf32>
    %32 = arith.mulf %31, %9 : vector<128x1xf32>
    %33 = vector.broadcast %32 : vector<128x1xf32> to vector<128x32xf32>
    %34 = arith.mulf %33, %24 : vector<128x32xf32>
    %35 = vector.shape_cast %34 : vector<128x32xf32> to vector<16x8x32xf32>
    %cst_14 = arith.constant dense<0.000000e+00> : vector<16x32xf32>
    %36 = vector.multi_reduction <add>, %35, %cst_14 [1] : vector<16x8x32xf32> to vector<16x32xf32>
    %cst_15 = arith.constant dense<0xFF800000> : vector<16x32xf32>
    %37 = vector.multi_reduction <maximumf>, %35, %cst_15 [1] : vector<16x8x32xf32> to vector<16x32xf32>
    %38 = arith.mulf %36, %37 : vector<16x32xf32>
    %39 = arith.index_cast %3 : i32 to index
    %c0_16 = arith.constant 0 : index
    %40 = vector.load %arg7[%39, %c0_16] : memref<32x32xf32, #tpu.memory_space<vmem>>, vector<16x32xf32>
    tpu.vector_store %arg7[%39, %c0_16], %38 {strides = array<i32>} : memref<32x32xf32, #tpu.memory_space<vmem>>, vector<16x32xf32>,
    %c1_i32 = arith.constant 1 : i32
    %c128_i32_17 = arith.constant 128 : i32
    %41 = arith.muli %c1_i32, %c128_i32_17 : i32
    %42 = tpu.assume_multiple %41, 128 : i32
    %c16_i32_18 = arith.constant 16 : i32
    %43 = arith.muli %c1_i32, %c16_i32_18 : i32
    %44 = tpu.assume_multiple %43, 16 : i32
    %45 = arith.index_cast %42 : i32 to index
    %c0_19 = arith.constant 0 : index
    %46 = vector.load %arg2[%45, %c0_19] : memref<256x16xbf16, #tpu.memory_space<vmem>>, vector<128x16xbf16>
    %47 = arith.index_cast %42 : i32 to index
    %c0_20 = arith.constant 0 : index
    %48 = vector.load %arg1[%47, %c0_20] : memref<256x128xbf16, #tpu.memory_space<vmem>>, vector<128x128xbf16>
    %49 = arith.index_cast %42 : i32 to index
    %c0_21 = arith.constant 0 : index
    %50 = vector.load %arg3[%49, %c0_21] : memref<256x1xf32, #tpu.memory_space<vmem>>, vector<128x1xf32>
    %c0_22 = arith.constant 0 : index
    %c0_23 = arith.constant 0 : index
    %51 = vector.load %arg4[%c0_22, %c0_23] : memref<16x32xbf16, #tpu.memory_space<vmem>>, vector<16x32xbf16>
    %cst_24 = arith.constant dense<0.000000e+00> : vector<128x32xf32>
    %52 = tpu.matmul %46, %51, %cst_24 {dimension_numbers = #tpu.dot_dimension_numbers<[1], [0], [0], [1], [0, 0, 1, 1], [], []>} : vector<128x16xbf16>, vector<16x32xbf16>, vector<128x32xf32> -> vector<128x32xf32>
    %53 = arith.extf %48 : vector<128x128xbf16> to vector<128x128xf32>
    %cst_25 = arith.constant dense<0.000000e+00> : vector<128x32xf32>
    %54 = tpu.matmul %53, %52, %cst_25 {dimension_numbers = #tpu.dot_dimension_numbers<[1], [0], [0], [1], [0, 0, 1, 1], [], []>} : vector<128x128xf32>, vector<128x32xf32>, vector<128x32xf32> -> vector<128x32xf32>
    %cst_26 = arith.constant 0.000000e+00 : f32
    %55 = vector.broadcast %cst_26 : f32 to vector<128x32xf32>
    %56 = arith.maximumf %54, %55 : vector<128x32xf32>
    %c0_27 = arith.constant 0 : index
    %c0_28 = arith.constant 0 : index
    %57 = vector.load %arg5[%c0_27, %c0_28] : memref<32x64xbf16, #tpu.memory_space<vmem>>, vector<32x64xbf16>
    %58 = arith.extf %57 : vector<32x64xbf16> to vector<32x64xf32>
    %cst_29 = arith.constant dense<0.000000e+00> : vector<128x64xf32>
    %59 = tpu.matmul %56, %58, %cst_29 {dimension_numbers = #tpu.dot_dimension_numbers<[1], [0], [0], [1], [0, 0, 1, 1], [], []>} : vector<128x32xf32>, vector<32x64xf32>, vector<128x64xf32> -> vector<128x64xf32>
    %c0_30 = arith.constant 0 : index
    %c0_31 = arith.constant 0 : index
    %60 = vector.load %arg6[%c0_30, %c0_31] : memref<1x64xf32, #tpu.memory_space<vmem>>, vector<1x64xf32>
    %61 = vector.broadcast %60 : vector<1x64xf32> to vector<128x64xf32>
    %62 = arith.addf %59, %61 : vector<128x64xf32>
    %63 = vector.extract_strided_slice %62 {offsets = [0, 0], sizes = [128, 32], strides = [1, 1]} : vector<128x64xf32> to vector<128x32xf32>
    %cst_32 = arith.constant 0.000000e+00 : f32
    %64 = vector.broadcast %cst_32 : f32 to vector<128x32xf32>
    %65 = arith.maximumf %63, %64 : vector<128x32xf32>
    %66 = vector.extract_strided_slice %62 {offsets = [0, 32], sizes = [128, 1], strides = [1, 1]} : vector<128x64xf32> to vector<128x1xf32>
    %cst_33 = arith.constant 0.000000e+00 : f32
    %67 = vector.broadcast %cst_33 : f32 to vector<128x1xf32>
    %68 = arith.subf %67, %66 : vector<128x1xf32>
    %69 = math.exp %68 : vector<128x1xf32>
    %cst_34 = arith.constant 1.000000e+00 : f32
    %70 = vector.broadcast %cst_34 : f32 to vector<128x1xf32>
    %71 = arith.addf %70, %69 : vector<128x1xf32>
    %72 = tpu.reciprocal %71 {approx = true} : vector<128x1xf32> -> vector<128x1xf32>
    %73 = arith.mulf %72, %50 : vector<128x1xf32>
    %74 = vector.broadcast %73 : vector<128x1xf32> to vector<128x32xf32>
    %75 = arith.mulf %74, %65 : vector<128x32xf32>
    %76 = vector.shape_cast %75 : vector<128x32xf32> to vector<16x8x32xf32>
    %cst_35 = arith.constant dense<0.000000e+00> : vector<16x32xf32>
    %77 = vector.multi_reduction <add>, %76, %cst_35 [1] : vector<16x8x32xf32> to vector<16x32xf32>
    %cst_36 = arith.constant dense<0xFF800000> : vector<16x32xf32>
    %78 = vector.multi_reduction <maximumf>, %76, %cst_36 [1] : vector<16x8x32xf32> to vector<16x32xf32>
    %79 = arith.mulf %77, %78 : vector<16x32xf32>
    %80 = arith.index_cast %44 : i32 to index
    %c0_37 = arith.constant 0 : index
    %81 = vector.load %arg7[%80, %c0_37] : memref<32x32xf32, #tpu.memory_space<vmem>>, vector<16x32xf32>
    tpu.vector_store %arg7[%80, %c0_37], %79 {strides = array<i32>} : memref<32x32xf32, #tpu.memory_space<vmem>>, vector<16x32xf32>,
    %c2_i32 = arith.constant 2 : i32
    return
  }
  func.func @transform_0(%arg0: i32) -> (i32, i32) {
    %c0_i32 = arith.constant 0 : i32
    %c0_i32_0 = arith.constant 0 : i32
    return %arg0, %c0_i32 : i32, i32
  }
  func.func @transform_1(%arg0: i32) -> (i32, i32) {
    %c0_i32 = arith.constant 0 : i32
    %c0_i32_0 = arith.constant 0 : i32
    return %arg0, %c0_i32 : i32, i32
  }
  func.func @transform_2(%arg0: i32) -> (i32, i32) {
    %c0_i32 = arith.constant 0 : i32
    %c0_i32_0 = arith.constant 0 : i32
    return %arg0, %c0_i32 : i32, i32
  }
  func.func @transform_3(%arg0: i32) -> (i32, i32) {
    %c0_i32 = arith.constant 0 : i32
    %c0_i32_0 = arith.constant 0 : i32
    %c0_i32_1 = arith.constant 0 : i32
    return %c0_i32, %c0_i32_0 : i32, i32
  }
  func.func @transform_4(%arg0: i32) -> (i32, i32) {
    %c0_i32 = arith.constant 0 : i32
    %c0_i32_0 = arith.constant 0 : i32
    %c0_i32_1 = arith.constant 0 : i32
    return %c0_i32, %c0_i32_0 : i32, i32
  }
  func.func @transform_5(%arg0: i32) -> (i32, i32) {
    %c0_i32 = arith.constant 0 : i32
    %c0_i32_0 = arith.constant 0 : i32
    %c0_i32_1 = arith.constant 0 : i32
    return %c0_i32, %c0_i32_0 : i32, i32
  }
  func.func @transform_6(%arg0: i32) -> (i32, i32) {
    %c0_i32 = arith.constant 0 : i32
    %c0_i32_0 = arith.constant 0 : i32
    return %arg0, %c0_i32 : i32, i32
  }
}

</mosaic_0001>

<llo_original>
// kernel: tpu_custom_call.1
$region0: #{tpu_custom_call.1}
  #allocation0 [shape = 'u32[]', space=smem, size = 0x4, offset = 0x4, fixed_abs, tag = 'smem constant byte address 0x4 - core index']
  #allocation1 [shape = 'u32[144,128]{1,0:T(1,128)}', space=vmem, size = 0x12000, scoped, tag = 'internal scratch']
  %s0 = inlined_call_operand.vmem [shape: bf16[512,128], index: 0, kind: input, shape index: {}]
  %s1 = inlined_call_operand.vmem [shape: bf16[512,16], index: 1, kind: input, shape index: {}]
  %s2 = inlined_call_operand.vmem [shape: f32[512,1], index: 2, kind: input, shape index: {}]
  %s3 = inlined_call_operand.vmem [shape: bf16[16,32], index: 3, kind: input, shape index: {}]
  %s4 = inlined_call_operand.vmem [shape: bf16[32,64], index: 4, kind: input, shape index: {}]
  %s5 = inlined_call_operand.vmem [shape: f32[1,64], index: 5, kind: input, shape index: {}]
  %s6 = inlined_call_operand.vmem [shape: f32[64,32], index: 6, kind: output, shape index: {}]
  %s7 = sld [smem:[#allocation0]]
  $region57: #{tpu_custom_call.1} parent=0
    _
  %s9 = ssub.s32 1, %s7
  %s10 = scalar_select 0, %s9, %s7
  loop: start=0, step=1, limit=4
  $region2: #{tpu_custom_call.1} parent=0 // loop_pre_header
    _
  $region3: #{tpu_custom_call.1} parent=0 // loop_header
    %s12 = sphi 0, %s16
    %p13 = scmp.ge.s32.totalorder %s12, 4
    %s22 = sphi 0, %s24
    %s25 = sphi 0, %s22
    %s26 = sphi 0, %s25
    %s42 = sphi 0, %s26
    %s48 = sphi 0, %s50
    %s51 = sphi 0, %s48
    %s52 = sphi 0, %s51
    %s68 = sphi 0, %s52
    %s74 = sphi 0, %s76
    %s77 = sphi 0, %s74
    %s78 = sphi 0, %s77
    %s94 = sphi 0, %s78
    %s98 = sphi 0, %s98
    %s100 = sphi 0, %s98
    %s101 = sphi 0, %s100
    %s115 = sphi 0, %s101
    %s119 = sphi 0, %s119
    %s121 = sphi 0, %s119
    %s122 = sphi 0, %s121
    %s136 = sphi 0, %s122
    %s140 = sphi 0, %s140
    %s142 = sphi 0, %s140
    %s143 = sphi 0, %s142
    %s157 = sphi 0, %s143
    %s163 = sphi 0, %s165
    %s166 = sphi 0, %s163
    %s167 = sphi 0, %s166
    %s183 = sphi 0, %s167
  $region4: #{tpu_custom_call.1} parent=0 // loop_header_branch
    %15 = sbr.rel (%p13) target = $region8
  $region5: #{tpu_custom_call.1} parent=0 // loop_body
    %s17 = ssub.s32 %s12, 1
    %s18 = ssub.s32 %s12, 2
    %s19 = sadd.s32 %s12, 1
    %s20 = ssub.s32 %s12, %s19
    %p21 = scmp.eq.s32.totalorder %s20, 0
    %s23 = sadd.s32 %s22, 1
    %s24 = scalar_select %p21, %s22, %s23
    %p27 = pneg %p21
    %p28 = scmp.eq.s32.totalorder %s12, 1
    %p29 = por %p27, %p28
    %p30 = scmp.ne.s32.totalorder %s22, %s25
    %p31 = scmp.eq.s32.totalorder %s12, 0
    %p32 = por %p30, %p31
    %p33 = scmp.ne.s32.totalorder %s22, %s25
    %p34 = scmp.eq.s32.totalorder %s17, 1
    %p35 = por %p33, %p34
    %p36 = scmp.ne.s32.totalorder %s25, %s26
    %p37 = scmp.eq.s32.totalorder %s17, 0
    %p38 = por %p36, %p37
    %p39 = scmp.ne.s32.totalorder %s25, %s26
    %p40 = scmp.eq.s32.totalorder %s18, 1
    %p41 = por %p39, %p40
    %p43 = scmp.ne.s32.totalorder %s26, %s42
    %p44 = scmp.eq.s32.totalorder %s18, 0
    %p45 = por %p43, %p44
    %s46 = ssub.s32 %s12, %s19
    %p47 = scmp.eq.s32.totalorder %s46, 0
    %s49 = sadd.s32 %s48, 1
    %s50 = scalar_select %p47, %s48, %s49
    %p53 = pneg %p47
    %p54 = scmp.eq.s32.totalorder %s12, 1
    %p55 = por %p53, %p54
    %p56 = scmp.ne.s32.totalorder %s48, %s51
    %p57 = scmp.eq.s32.totalorder %s12, 0
    %p58 = por %p56, %p57
    %p59 = scmp.ne.s32.totalorder %s48, %s51
    %p60 = scmp.eq.s32.totalorder %s17, 1
    %p61 = por %p59, %p60
    %p62 = scmp.ne.s32.totalorder %s51, %s52
    %p63 = scmp.eq.s32.totalorder %s17, 0
    %p64 = por %p62, %p63
    %p65 = scmp.ne.s32.totalorder %s51, %s52
    %p66 = scmp.eq.s32.totalorder %s18, 1
    %p67 = por %p65, %p66
    %p69 = scmp.ne.s32.totalorder %s52, %s68
    %p70 = scmp.eq.s32.totalorder %s18, 0
    %p71 = por %p69, %p70
    %s72 = ssub.s32 %s12, %s19
    %p73 = scmp.eq.s32.totalorder %s72, 0
    %s75 = sadd.s32 %s74, 1
    %s76 = scalar_select %p73, %s74, %s75
    %p79 = pneg %p73
    %p80 = scmp.eq.s32.totalorder %s12, 1
    %p81 = por %p79, %p80
    %p82 = scmp.ne.s32.totalorder %s74, %s77
    %p83 = scmp.eq.s32.totalorder %s12, 0
    %p84 = por %p82, %p83
    %p85 = scmp.ne.s32.totalorder %s74, %s77
    %p86 = scmp.eq.s32.totalorder %s17, 1
    %p87 = por %p85, %p86
    %p88 = scmp.ne.s32.totalorder %s77, %s78
    %p89 = scmp.eq.s32.totalorder %s17, 0
    %p90 = por %p88, %p89
    %p91 = scmp.ne.s32.totalorder %s77, %s78
    %p92 = scmp.eq.s32.totalorder %s18, 1
    %p93 = por %p91, %p92
    %p95 = scmp.ne.s32.totalorder %s78, %s94
    %p96 = scmp.eq.s32.totalorder %s18, 0
    %p97 = por %p95, %p96
    %s99 = sadd.s32 %s98, 1
    %p102 = scmp.eq.s32.totalorder %s12, 1
    %p103 = scmp.ne.s32.totalorder %s98, %s100
    %p104 = scmp.eq.s32.totalorder %s12, 0
    %p105 = por %p103, %p104
    %p106 = scmp.ne.s32.totalorder %s98, %s100
    %p107 = scmp.eq.s32.totalorder %s17, 1
    %p108 = por %p106, %p107
    %p109 = scmp.ne.s32.totalorder %s100, %s101
    %p110 = scmp.eq.s32.totalorder %s17, 0
    %p111 = por %p109, %p110
    %p112 = scmp.ne.s32.totalorder %s100, %s101
    %p113 = scmp.eq.s32.totalorder %s18, 1
    %p114 = por %p112, %p113
    %p116 = scmp.ne.s32.totalorder %s101, %s115
    %p117 = scmp.eq.s32.totalorder %s18, 0
    %p118 = por %p116, %p117
    %s120 = sadd.s32 %s119, 1
    %p123 = scmp.eq.s32.totalorder %s12, 1
    %p124 = scmp.ne.s32.totalorder %s119, %s121
    %p125 = scmp.eq.s32.totalorder %s12, 0
    %p126 = por %p124, %p125
    %p127 = scmp.ne.s32.totalorder %s119, %s121
    %p128 = scmp.eq.s32.totalorder %s17, 1
    %p129 = por %p127, %p128
    %p130 = scmp.ne.s32.totalorder %s121, %s122
    %p131 = scmp.eq.s32.totalorder %s17, 0
    %p132 = por %p130, %p131
    %p133 = scmp.ne.s32.totalorder %s121, %s122
    %p134 = scmp.eq.s32.totalorder %s18, 1
    %p135 = por %p133, %p134
    %p137 = scmp.ne.s32.totalorder %s122, %s136
    %p138 = scmp.eq.s32.totalorder %s18, 0
    %p139 = por %p137, %p138
    %s141 = sadd.s32 %s140, 1
    %p144 = scmp.eq.s32.totalorder %s12, 1
    %p145 = scmp.ne.s32.totalorder %s140, %s142
    %p146 = scmp.eq.s32.totalorder %s12, 0
    %p147 = por %p145, %p146
    %p148 = scmp.ne.s32.totalorder %s140, %s142
    %p149 = scmp.eq.s32.totalorder %s17, 1
    %p150 = por %p148, %p149
    %p151 = scmp.ne.s32.totalorder %s142, %s143
    %p152 = scmp.eq.s32.totalorder %s17, 0
    %p153 = por %p151, %p152
    %p154 = scmp.ne.s32.totalorder %s142, %s143
    %p155 = scmp.eq.s32.totalorder %s18, 1
    %p156 = por %p154, %p155
    %p158 = scmp.ne.s32.totalorder %s143, %s157
    %p159 = scmp.eq.s32.totalorder %s18, 0
    %p160 = por %p158, %p159
    %s161 = ssub.s32 %s12, %s19
    %p162 = scmp.eq.s32.totalorder %s161, 0
    %s164 = sadd.s32 %s163, 1
    %s165 = scalar_select %p162, %s163, %s164
    %p168 = pneg %p162
    %p169 = scmp.eq.s32.totalorder %s12, 1
    %p170 = por %p168, %p169
    %p171 = scmp.ne.s32.totalorder %s163, %s166
    %p172 = scmp.eq.s32.totalorder %s12, 0
    %p173 = por %p171, %p172
    %p174 = scmp.ne.s32.totalorder %s163, %s166
    %p175 = scmp.eq.s32.totalorder %s17, 1
    %p176 = por %p174, %p175
    %p177 = scmp.ne.s32.totalorder %s166, %s167
    %p178 = scmp.eq.s32.totalorder %s17, 0
    %p179 = por %p177, %p178
    %p180 = scmp.ne.s32.totalorder %s166, %s167
    %p181 = scmp.eq.s32.totalorder %s18, 1
    %p182 = por %p180, %p181
    %p184 = scmp.ne.s32.totalorder %s167, %s183
    %p185 = scmp.eq.s32.totalorder %s18, 0
    %p186 = por %p184, %p185
    %p187 = scmp.le.s32.totalorder 1, %s12
    %p188 = scmp.lt.s32.totalorder %s12, 3
    %p189 = pnand %p187, %p188
    %p190 = pneg %p189
    // Predicated region
    $region9: #{tpu_custom_call.1} parent=5 // pred_check
      _
    $region10: #{tpu_custom_call.1} parent=5 // pred_check_branch
      %192 = sbr.rel (%p189) target = $region12
    $region11: #{tpu_custom_call.1} parent=5 // pred_region
      %s193 = ssub.s32 %s12, 1
      // Predicated region
      $region13: #{tpu_custom_call.1} parent=11 // pred_check
        %p194 = pneg %p111
      $region14: #{tpu_custom_call.1} parent=11 // pred_check_branch
        %196 = sbr.rel (%p194) target = $region16
      $region15: #{tpu_custom_call.1} parent=11 // pred_region
        _
      $region16: #{tpu_custom_call.1} parent=11 // pred_fallthru
        _
      // Predicated region
      $region17: #{tpu_custom_call.1} parent=11 // pred_check
        %p197 = pneg %p132
      $region18: #{tpu_custom_call.1} parent=11 // pred_check_branch
        %199 = sbr.rel (%p197) target = $region20
      $region19: #{tpu_custom_call.1} parent=11 // pred_region
        _
      $region20: #{tpu_custom_call.1} parent=11 // pred_fallthru
        _
      // Predicated region
      $region21: #{tpu_custom_call.1} parent=11 // pred_check
        %p200 = pneg %p153
      $region22: #{tpu_custom_call.1} parent=11 // pred_check_branch
        %202 = sbr.rel (%p200) target = $region24
      $region23: #{tpu_custom_call.1} parent=11 // pred_region
        _
      $region24: #{tpu_custom_call.1} parent=11 // pred_fallthru
        _
    $region12: #{tpu_custom_call.1} parent=5 // pred_fallthru
      _
    %p203 = scmp.lt.s32.totalorder %s12, 2
    // Predicated region
    $region25: #{tpu_custom_call.1} parent=5 // pred_check
      %p204 = pneg %p203
    $region26: #{tpu_custom_call.1} parent=5 // pred_check_branch
      %206 = sbr.rel (%p204) target = $region28
    $region27: #{tpu_custom_call.1} parent=5 // pred_region
      // Predicated region
      $region29: #{tpu_custom_call.1} parent=27 // pred_check
        %p207 = pneg %p32
      $region30: #{tpu_custom_call.1} parent=27 // pred_check_branch
        %209 = sbr.rel (%p207) target = $region32
      $region31: #{tpu_custom_call.1} parent=27 // pred_region
        %s210 = smul.u32 32, %s12
        %p211 = scmp.lt.s32.totalorder %s210, 63
        %s212 = scalar_select %p211, %s210, 63
        %s213 = smul.addr %s212, 4
        %s214 = scalar_lea.vmem %s0, %s213
        %s215 = smul.u32 32, %s12
      $region32: #{tpu_custom_call.1} parent=27 // pred_fallthru
        _
      // Predicated region
      $region33: #{tpu_custom_call.1} parent=27 // pred_check
        %p216 = pneg %p58
      $region34: #{tpu_custom_call.1} parent=27 // pred_check_branch
        %218 = sbr.rel (%p216) target = $region36
      $region35: #{tpu_custom_call.1} parent=27 // pred_region
        %s219 = smul.u32 32, %s12
        %p220 = scmp.lt.s32.totalorder %s219, 63
        %s221 = scalar_select %p220, %s219, 63
        %s222 = smul.addr %s221, 4
        %s223 = scalar_lea.vmem %s1, %s222
        %s224 = smul.u32 32, %s12
      $region36: #{tpu_custom_call.1} parent=27 // pred_fallthru
        _
      // Predicated region
      $region37: #{tpu_custom_call.1} parent=27 // pred_check
        %p225 = pneg %p84
      $region38: #{tpu_custom_call.1} parent=27 // pred_check_branch
        %227 = sbr.rel (%p225) target = $region40
      $region39: #{tpu_custom_call.1} parent=27 // pred_region
        %s228 = smul.u32 32, %s12
        %p229 = scmp.lt.s32.totalorder %s228, 63
        %s230 = scalar_select %p229, %s228, 63
        %s231 = smul.addr %s230, 8
        %s232 = scalar_lea.vmem %s2, %s231
        %s233 = smul.u32 32, %s12
      $region40: #{tpu_custom_call.1} parent=27 // pred_fallthru
        _
    $region28: #{tpu_custom_call.1} parent=5 // pred_fallthru
      _
    %p234 = scmp.le.s32.totalorder 1, %s12
    %p235 = scmp.lt.s32.totalorder %s12, 3
    %p236 = pnand %p234, %p235
    %p237 = pneg %p236
    // Predicated region
    $region41: #{tpu_custom_call.1} parent=5 // pred_check
      _
    $region42: #{tpu_custom_call.1} parent=5 // pred_check_branch
      %239 = sbr.rel (%p236) target = $region44
    $region43: #{tpu_custom_call.1} parent=5 // pred_region
      %s240 = ssub.s32 %s12, 1
      %s241 = smul.u32 32, %s17
      %p242 = scmp.lt.s32.totalorder %s241, 63
      %s243 = scalar_select %p242, %s241, 63
      %s244 = smul.addr %s243, 4
      %s245 = scalar_lea.vmem %s0, %s244
      %p246 = pneg %p38
      %p247 = pneg %p35
      %s248 = smul.u32 32, %s17
      %p249 = scmp.lt.s32.totalorder %s248, 63
      %s250 = scalar_select %p249, %s248, 63
      %s251 = smul.addr %s250, 4
      %s252 = scalar_lea.vmem %s1, %s251
      %p253 = pneg %p64
      %p254 = pneg %p61
      %s255 = smul.u32 32, %s17
      %p256 = scmp.lt.s32.totalorder %s255, 63
      %s257 = scalar_select %p256, %s255, 63
      %s258 = smul.addr %s257, 8
      %s259 = scalar_lea.vmem %s2, %s258
      %p260 = pneg %p90
      %p261 = pneg %p87
      %p262 = pneg %p111
      %p263 = pneg %p108
      %p264 = pneg %p132
      %p265 = pneg %p129
      %p266 = pneg %p153
      %p267 = pneg %p150
      %p268 = pneg %p179
      %p269 = pneg %p176
      %s270 = smul.u32 4, %s17
      %p271 = scmp.lt.s32.totalorder %s270, 7
      %s272 = scalar_select %p271, %s270, 7
      %s273 = smul.addr %s272, 8
      %s274 = scalar_lea.vmem %s6, %s273
      %s275 = smul.u32 32, %s17
      %p276 = scmp.lt.s32.totalorder %s275, 63
      %s277 = scalar_select %p276, %s275, 63
      %s278 = smul.addr %s277, 4
      %s279 = scalar_lea.vmem %s0, %s278
      %s280 = smul.u32 32, %s17
      %s281 = smul.u32 32, %s17
      %p282 = scmp.lt.s32.totalorder %s281, 63
      %s283 = scalar_select %p282, %s281, 63
      %s284 = smul.addr %s283, 4
      %s285 = scalar_lea.vmem %s1, %s284
      %s286 = smul.u32 32, %s17
      %s287 = smul.u32 32, %s17
      %p288 = scmp.lt.s32.totalorder %s287, 63
      %s289 = scalar_select %p288, %s287, 63
      %s290 = smul.addr %s289, 8
      %s291 = scalar_lea.vmem %s2, %s290
      %s292 = smul.u32 32, %s17
      %s293 = smul.u32 4, %s17
      %p294 = scmp.lt.s32.totalorder %s293, 7
      %s295 = scalar_select %p294, %s293, 7
      %s296 = smul.addr %s295, 8
      %s297 = scalar_lea.vmem %s6, %s296
      %s298 = smul.u32 4, %s17
      %v300 = vld [vmem:[%s285] sm:$0xf]
      %v301 = vld [vmem:[%s285 + $0x4] sm:$0xf]
      %v302 = vld [vmem:[%s285 + $0x8] sm:$0xf]
      %v303 = vld [vmem:[%s285 + $0xc] sm:$0xf]
      %v304 = vld [vmem:[%s285 + $0x10] sm:$0xf]
      %v305 = vld [vmem:[%s285 + $0x14] sm:$0xf]
      %v306 = vld [vmem:[%s285 + $0x18] sm:$0xf]
      %v307 = vld [vmem:[%s285 + $0x1c] sm:$0xf]
      %v308 = vld [vmem:[%s285 + $0x20] sm:$0xf]
      %v309 = vld [vmem:[%s285 + $0x24] sm:$0xf]
      %v310 = vld [vmem:[%s285 + $0x28] sm:$0xf]
      %v311 = vld [vmem:[%s285 + $0x2c] sm:$0xf]
      %v312 = vld [vmem:[%s285 + $0x30] sm:$0xf]
      %v313 = vld [vmem:[%s285 + $0x34] sm:$0xf]
      %v314 = vld [vmem:[%s285 + $0x38] sm:$0xf]
      %v315 = vld [vmem:[%s285 + $0x3c] sm:$0xf]
      %v316 = vld [vmem:[%s279] sm:$0xf]
      %v317 = vld [vmem:[%s279 + $0x4] sm:$0xf]
      %v318 = vld [vmem:[%s279 + $0x8] sm:$0xf]
      %v319 = vld [vmem:[%s279 + $0xc] sm:$0xf]
      %v320 = vld [vmem:[%s279 + $0x10] sm:$0xf]
      %v321 = vld [vmem:[%s279 + $0x14] sm:$0xf]
      %v322 = vld [vmem:[%s279 + $0x18] sm:$0xf]
      %v323 = vld [vmem:[%s279 + $0x1c] sm:$0xf]
      %v324 = vld [vmem:[%s279 + $0x20] sm:$0xf]
      %v325 = vld [vmem:[%s279 + $0x24] sm:$0xf]
      %v326 = vld [vmem:[%s279 + $0x28] sm:$0xf]
      %v327 = vld [vmem:[%s279 + $0x2c] sm:$0xf]
      %v328 = vld [vmem:[%s279 + $0x30] sm:$0xf]
      %v329 = vld [vmem:[%s279 + $0x34] sm:$0xf]
      %v330 = vld [vmem:[%s279 + $0x38] sm:$0xf]
      %v331 = vld [vmem:[%s279 + $0x3c] sm:$0xf]
      %v332 = vld [vmem:[%s291] sm:$0xff]
      %v333 = vld [vmem:[%s291 + $0x8] sm:$0xff]
      %v334 = vld [vmem:[%s291 + $0x10] sm:$0xff]
      %v335 = vld [vmem:[%s291 + $0x18] sm:$0xff]
      %v336 = vld [vmem:[%s291 + $0x20] sm:$0xff]
      %v337 = vld [vmem:[%s291 + $0x28] sm:$0xff]
      %v338 = vld [vmem:[%s291 + $0x30] sm:$0xff]
      %v339 = vld [vmem:[%s291 + $0x38] sm:$0xff]
      %v340 = vld [vmem:[%s291 + $0x40] sm:$0xff]
      %v341 = vld [vmem:[%s291 + $0x48] sm:$0xff]
      %v342 = vld [vmem:[%s291 + $0x50] sm:$0xff]
      %v343 = vld [vmem:[%s291 + $0x58] sm:$0xff]
      %v344 = vld [vmem:[%s291 + $0x60] sm:$0xff]
      %v345 = vld [vmem:[%s291 + $0x68] sm:$0xff]
      %v346 = vld [vmem:[%s291 + $0x70] sm:$0xff]
      %v347 = vld [vmem:[%s291 + $0x78] sm:$0xff]
      %v348 = vld [vmem:[%s3] sm:$0xf]
      %v349 = vld [vmem:[%s3 + $0x4] sm:$0xf]
      %v366 = vunpack.c.l.b16 %v300
      %v367 = vunpack.c.l.b16 %v301
      %v368 = vunpack.c.l.b16 %v302
      %v369 = vunpack.c.l.b16 %v303
      %v370 = vunpack.c.l.b16 %v304
      %v371 = vunpack.c.l.b16 %v305
      %v372 = vunpack.c.l.b16 %v306
      %v373 = vunpack.c.l.b16 %v307
      %v374 = vunpack.c.l.b16 %v308
      %v375 = vunpack.c.l.b16 %v309
      %v376 = vunpack.c.l.b16 %v310
      %v377 = vunpack.c.l.b16 %v311
      %v378 = vunpack.c.l.b16 %v312
      %v379 = vunpack.c.l.b16 %v313
      %v380 = vunpack.c.l.b16 %v314
      %v381 = vunpack.c.l.b16 %v315
      %v382 = vpack.c.b16 %v367, %v366
      %v383 = vpack.c.b16 %v369, %v368
      %v384 = vpack.c.b16 %v371, %v370
      %v385 = vpack.c.b16 %v373, %v372
      %v386 = vpack.c.b16 %v375, %v374
      %v387 = vpack.c.b16 %v377, %v376
      %v388 = vpack.c.b16 %v379, %v378
      %v389 = vpack.c.b16 %v381, %v380
      %v392 = vunpack.c.l.b16 %v348
      %v393 = vunpack.c.l.b16 %v349
      %v394 = vpack.c.b16 %v393, %v392
      %vm396 = vcmask 130048
      %v398 = vsel %vm396, %v382, 0
      %v401 = vsel %vm396, %v383, 0
      %v404 = vsel %vm396, %v384, 0
      %v407 = vsel %vm396, %v385, 0
      %v410 = vsel %vm396, %v386, 0
      %v413 = vsel %vm396, %v387, 0
      %v416 = vsel %vm396, %v388, 0
      %v419 = vsel %vm396, %v389, 0
      %421 = vmatprep.subr.bf16.mxu0 0
      %422 = vmatpush1.bf16.msra.mxu0 %v394
      %423 = vmatprep.subr.bf16.mxu0 0
      %424 = vmatpush1.bf16.msra.mxu0 0
      %425 = vmatprep.subr.bf16.mxu0 0
      %426 = vmatpush1.bf16.msra.mxu0 0
      %427 = vmatprep.subr.bf16.mxu0 0
      %428 = vmatpush1.bf16.msra.mxu0 0
      %429 = vmatprep.subr.bf16.mxu0 0
      %430 = vmatpush1.bf16.msra.mxu0 0
      %431 = vmatprep.subr.bf16.mxu0 0
      %432 = vmatpush1.bf16.msra.mxu0 0
      %433 = vmatprep.subr.bf16.mxu0 0
      %434 = vmatpush1.bf16.msra.mxu0 0
      %435 = vmatprep.subr.bf16.mxu0 0
      %436 = vmatpush1.bf16.msra.mxu0 0
      %437 = vmatprep.subr.bf16.mxu0 0
      %438 = vmatpush1.bf16.msra.mxu0 0
      %439 = vmatprep.subr.bf16.mxu0 0
      %440 = vmatpush1.bf16.msra.mxu0 0
      %441 = vmatprep.subr.bf16.mxu0 0
      %442 = vmatpush1.bf16.msra.mxu0 0
      %443 = vmatprep.subr.bf16.mxu0 0
      %444 = vmatpush1.bf16.msra.mxu0 0
      %445 = vmatprep.subr.bf16.mxu0 0
      %446 = vmatpush1.bf16.msra.mxu0 0
      %447 = vmatprep.subr.bf16.mxu0 0
      %448 = vmatpush1.bf16.msra.mxu0 0
      %449 = vmatprep.subr.bf16.mxu0 0
      %450 = vmatpush1.bf16.msra.mxu0 0
      %451 = vmatprep.subr.bf16.mxu0 0
      %452 = vmatpush1.bf16.msra.mxu0 0
      %453 = vmatprep.mubr.bf16.mxu0 0
      %454 = vmatmul.mubr.bf16.gmra.mrb[0].mxu0 %v398
      %v455 = vpop.f32.mrb[0].mxu0
      %v456 = vadd.f32 0.0, %v455
      %v457 = vpop.f32.mrb[0].mxu0
      %v458 = vpop.f32.mrb[0].mxu0
      %v459 = vadd.f32 0.0, %v458
      %v460 = vpop.f32.mrb[0].mxu0
      %461 = vmatprep.mubr.bf16.mxu0 0
      %462 = vmatmul.mubr.bf16.gmra.mrb[0].mxu0 %v401
      %v463 = vpop.f32.mrb[0].mxu0
      %v464 = vadd.f32 0.0, %v463
      %v465 = vpop.f32.mrb[0].mxu0
      %v466 = vpop.f32.mrb[0].mxu0
      %v467 = vadd.f32 0.0, %v466
      %v468 = vpop.f32.mrb[0].mxu0
      %469 = vmatprep.mubr.bf16.mxu0 0
      %470 = vmatmul.mubr.bf16.gmra.mrb[0].mxu0 %v404
      %v471 = vpop.f32.mrb[0].mxu0
      %v472 = vadd.f32 0.0, %v471
      %v473 = vpop.f32.mrb[0].mxu0
      %v474 = vpop.f32.mrb[0].mxu0
      %v475 = vadd.f32 0.0, %v474
      %v476 = vpop.f32.mrb[0].mxu0
      %477 = vmatprep.mubr.bf16.mxu0 0
      %478 = vmatmul.mubr.bf16.gmra.mrb[0].mxu0 %v407
      %v479 = vpop.f32.mrb[0].mxu0
      %v480 = vadd.f32 0.0, %v479
      %v481 = vpop.f32.mrb[0].mxu0
      %v482 = vpop.f32.mrb[0].mxu0
      %v483 = vadd.f32 0.0, %v482
      %v484 = vpop.f32.mrb[0].mxu0
      %485 = vmatprep.mubr.bf16.mxu0 0
      %486 = vmatmul.mubr.bf16.gmra.mrb[0].mxu0 %v410
      %v487 = vpop.f32.mrb[0].mxu0
      %v488 = vadd.f32 0.0, %v487
      %v489 = vpop.f32.mrb[0].mxu0
      %v490 = vpop.f32.mrb[0].mxu0
      %v491 = vadd.f32 0.0, %v490
      %v492 = vpop.f32.mrb[0].mxu0
      %493 = vmatprep.mubr.bf16.mxu0 0
      %494 = vmatmul.mubr.bf16.gmra.mrb[0].mxu0 %v413
      %v495 = vpop.f32.mrb[0].mxu0
      %v496 = vadd.f32 0.0, %v495
      %v497 = vpop.f32.mrb[0].mxu0
      %v498 = vpop.f32.mrb[0].mxu0
      %v499 = vadd.f32 0.0, %v498
      %v500 = vpop.f32.mrb[0].mxu0
      %501 = vmatprep.mubr.bf16.mxu0 0
      %502 = vmatmul.mubr.bf16.gmra.mrb[0].mxu0 %v416
      %v503 = vpop.f32.mrb[0].mxu0
      %v504 = vadd.f32 0.0, %v503
      %v505 = vpop.f32.mrb[0].mxu0
      %v506 = vpop.f32.mrb[0].mxu0
      %v507 = vadd.f32 0.0, %v506
      %v508 = vpop.f32.mrb[0].mxu0
      %509 = vmatprep.mubr.bf16.mxu0 0
      %510 = vmatmul.mubr.bf16.gmra.mrb[0].mxu0 %v419
      %v511 = vpop.f32.mrb[0].mxu0
      %v512 = vadd.f32 0.0, %v511
      %v513 = vpop.f32.mrb[0].mxu0
      %v514 = vpop.f32.mrb[0].mxu0
      %v515 = vadd.f32 0.0, %v514
      %v516 = vpop.f32.mrb[0].mxu0
      %517 = vdwg.mxu0
      %v518 = vunpack.c.l.bf16 %v316
      %v519 = vunpack.c.l.bf16 %v317
      %v520 = vunpack.c.l.bf16 %v318
      %v521 = vunpack.c.l.bf16 %v319
      %v522 = vunpack.c.l.bf16 %v320
      %v523 = vunpack.c.l.bf16 %v321
      %v524 = vunpack.c.l.bf16 %v322
      %v525 = vunpack.c.l.bf16 %v323
      %v526 = vunpack.c.l.bf16 %v324
      %v527 = vunpack.c.l.bf16 %v325
      %v528 = vunpack.c.l.bf16 %v326
      %v529 = vunpack.c.l.bf16 %v327
      %v530 = vunpack.c.l.bf16 %v328
      %v531 = vunpack.c.l.bf16 %v329
      %v532 = vunpack.c.l.bf16 %v330
      %v533 = vunpack.c.l.bf16 %v331
      %534 = vmatprep.subr.mxu0 0.0
      %535 = vmatpush1.msra.mxu0 %v456
      %536 = vmatprep.subr.mxu0 0.0
      %537 = vmatpush1.msra.mxu0 %v459
      %538 = vmatprep.subr.mxu0 0.0
      %539 = vmatpush1.msra.mxu0 %v464
      %540 = vmatprep.subr.mxu0 0.0
      %541 = vmatpush1.msra.mxu0 %v467
      %542 = vmatprep.subr.mxu0 0.0
      %543 = vmatpush1.msra.mxu0 %v472
      %544 = vmatprep.subr.mxu0 0.0
      %545 = vmatpush1.msra.mxu0 %v475
      %546 = vmatprep.subr.mxu0 0.0
      %547 = vmatpush1.msra.mxu0 %v480
      %548 = vmatprep.subr.mxu0 0.0
      %549 = vmatpush1.msra.mxu0 %v483
      %550 = vmatprep.subr.mxu0 0.0
      %551 = vmatpush1.msra.mxu0 %v488
      %552 = vmatprep.subr.mxu0 0.0
      %553 = vmatpush1.msra.mxu0 %v491
      %554 = vmatprep.subr.mxu0 0.0
      %555 = vmatpush1.msra.mxu0 %v496
      %556 = vmatprep.subr.mxu0 0.0
      %557 = vmatpush1.msra.mxu0 %v499
      %558 = vmatprep.subr.mxu0 0.0
      %559 = vmatpush1.msra.mxu0 %v504
      %560 = vmatprep.subr.mxu0 0.0
      %561 = vmatpush1.msra.mxu0 %v507
      %562 = vmatprep.subr.mxu0 0.0
      %563 = vmatpush1.msra.mxu0 %v512
      %564 = vmatprep.subr.mxu0 0.0
      %565 = vmatpush1.msra.mxu0 %v515
      %566 = vmatprep.subr.mxu0 0.0
      %567 = vmatpush1.msra.mxu0 0.0
      %568 = vmatprep.subr.mxu0 0.0
      %569 = vmatpush1.msra.mxu0 0.0
      %570 = vmatprep.subr.mxu0 0.0
      %571 = vmatpush1.msra.mxu0 0.0
      %572 = vmatprep.subr.mxu0 0.0
      %573 = vmatpush1.msra.mxu0 0.0
      %574 = vmatprep.subr.mxu0 0.0
      %575 = vmatpush1.msra.mxu0 0.0
      %576 = vmatprep.subr.mxu0 0.0
      %577 = vmatpush1.msra.mxu0 0.0
      %578 = vmatprep.subr.mxu0 0.0
      %579 = vmatpush1.msra.mxu0 0.0
      %580 = vmatprep.subr.mxu0 0.0
      %581 = vmatpush1.msra.mxu0 0.0
      %582 = vmatprep.subr.mxu0 0.0
      %583 = vmatpush1.msra.mxu0 0.0
      %584 = vmatprep.subr.mxu0 0.0
      %585 = vmatpush1.msra.mxu0 0.0
      %586 = vmatprep.subr.mxu0 0.0
      %587 = vmatpush1.msra.mxu0 0.0
      %588 = vmatprep.subr.mxu0 0.0
      %589 = vmatpush1.msra.mxu0 0.0
      %590 = vmatprep.subr.mxu0 0.0
      %591 = vmatpush1.msra.mxu0 0.0
      %592 = vmatprep.subr.mxu0 0.0
      %593 = vmatpush1.msra.mxu0 0.0
      %594 = vmatprep.subr.mxu0 0.0
      %595 = vmatpush1.msra.mxu0 0.0
      %596 = vmatprep.subr.mxu0 0.0
      %597 = vmatpush1.msra.mxu0 0.0
      %598 = vmatprep.mubr.f32.mxu0 0.0
      %599 = vmatmul.mubr.f32.gmra.mrb[0].mxu0 %v518
      %v600 = vpop.f32.mrb[0].mxu0
      %v601 = vadd.f32 0.0, %v600
      %v602 = vpop.f32.mrb[0].mxu0
      %603 = vmatprep.mubr.f32.mxu0 0.0
      %604 = vmatmul.mubr.f32.gmra.mrb[0].mxu0 %v519
      %v605 = vpop.f32.mrb[0].mxu0
      %v606 = vadd.f32 0.0, %v605
      %v607 = vpop.f32.mrb[0].mxu0
      %608 = vmatprep.mubr.f32.mxu0 0.0
      %609 = vmatmul.mubr.f32.gmra.mrb[0].mxu0 %v520
      %v610 = vpop.f32.mrb[0].mxu0
      %v611 = vadd.f32 0.0, %v610
      %v612 = vpop.f32.mrb[0].mxu0
      %613 = vmatprep.mubr.f32.mxu0 0.0
      %614 = vmatmul.mubr.f32.gmra.mrb[0].mxu0 %v521
      %v615 = vpop.f32.mrb[0].mxu0
      %v616 = vadd.f32 0.0, %v615
      %v617 = vpop.f32.mrb[0].mxu0
      %618 = vmatprep.mubr.f32.mxu0 0.0
      %619 = vmatmul.mubr.f32.gmra.mrb[0].mxu0 %v522
      %v620 = vpop.f32.mrb[0].mxu0
      %v621 = vadd.f32 0.0, %v620
      %v622 = vpop.f32.mrb[0].mxu0
      %623 = vmatprep.mubr.f32.mxu0 0.0
      %624 = vmatmul.mubr.f32.gmra.mrb[0].mxu0 %v523
      %v625 = vpop.f32.mrb[0].mxu0
      %v626 = vadd.f32 0.0, %v625
      %v627 = vpop.f32.mrb[0].mxu0
      %628 = vmatprep.mubr.f32.mxu0 0.0
      %629 = vmatmul.mubr.f32.gmra.mrb[0].mxu0 %v524
      %v630 = vpop.f32.mrb[0].mxu0
      %v631 = vadd.f32 0.0, %v630
      %v632 = vpop.f32.mrb[0].mxu0
      %633 = vmatprep.mubr.f32.mxu0 0.0
      %634 = vmatmul.mubr.f32.gmra.mrb[0].mxu0 %v525
      %v635 = vpop.f32.mrb[0].mxu0
      %v636 = vadd.f32 0.0, %v635
      %v637 = vpop.f32.mrb[0].mxu0
      %638 = vmatprep.mubr.f32.mxu0 0.0
      %639 = vmatmul.mubr.f32.gmra.mrb[0].mxu0 %v526
      %v640 = vpop.f32.mrb[0].mxu0
      %v641 = vadd.f32 0.0, %v640
      %v642 = vpop.f32.mrb[0].mxu0
      %643 = vmatprep.mubr.f32.mxu0 0.0
      %644 = vmatmul.mubr.f32.gmra.mrb[0].mxu0 %v527
      %v645 = vpop.f32.mrb[0].mxu0
      %v646 = vadd.f32 0.0, %v645
      %v647 = vpop.f32.mrb[0].mxu0
      %648 = vmatprep.mubr.f32.mxu0 0.0
      %649 = vmatmul.mubr.f32.gmra.mrb[0].mxu0 %v528
      %v650 = vpop.f32.mrb[0].mxu0
      %v651 = vadd.f32 0.0, %v650
      %v652 = vpop.f32.mrb[0].mxu0
      %653 = vmatprep.mubr.f32.mxu0 0.0
      %654 = vmatmul.mubr.f32.gmra.mrb[0].mxu0 %v529
      %v655 = vpop.f32.mrb[0].mxu0
      %v656 = vadd.f32 0.0, %v655
      %v657 = vpop.f32.mrb[0].mxu0
      %658 = vmatprep.mubr.f32.mxu0 0.0
      %659 = vmatmul.mubr.f32.gmra.mrb[0].mxu0 %v530
      %v660 = vpop.f32.mrb[0].mxu0
      %v661 = vadd.f32 0.0, %v660
      %v662 = vpop.f32.mrb[0].mxu0
      %663 = vmatprep.mubr.f32.mxu0 0.0
      %664 = vmatmul.mubr.f32.gmra.mrb[0].mxu0 %v531
      %v665 = vpop.f32.mrb[0].mxu0
      %v666 = vadd.f32 0.0, %v665
      %v667 = vpop.f32.mrb[0].mxu0
      %668 = vmatprep.mubr.f32.mxu0 0.0
      %669 = vmatmul.mubr.f32.gmra.mrb[0].mxu0 %v532
      %v670 = vpop.f32.mrb[0].mxu0
      %v671 = vadd.f32 0.0, %v670
      %v672 = vpop.f32.mrb[0].mxu0
      %673 = vmatprep.mubr.f32.mxu0 0.0
      %674 = vmatmul.mubr.f32.gmra.mrb[0].mxu0 %v533
      %v675 = vpop.f32.mrb[0].mxu0
      %v676 = vadd.f32 0.0, %v675
      %v677 = vpop.f32.mrb[0].mxu0
      %678 = vdwg.mxu0
      %v679 = vmax.f32 %v601, 0.0
      %v680 = vmax.f32 %v606, 0.0
      %v681 = vmax.f32 %v611, 0.0
      %v682 = vmax.f32 %v616, 0.0
      %v683 = vmax.f32 %v621, 0.0
      %v684 = vmax.f32 %v626, 0.0
      %v685 = vmax.f32 %v631, 0.0
      %v686 = vmax.f32 %v636, 0.0
      %v687 = vmax.f32 %v641, 0.0
      %v688 = vmax.f32 %v646, 0.0
      %v689 = vmax.f32 %v651, 0.0
      %v690 = vmax.f32 %v656, 0.0
      %v691 = vmax.f32 %v661, 0.0
      %v692 = vmax.f32 %v666, 0.0
      %v693 = vmax.f32 %v671, 0.0
      %v694 = vmax.f32 %v676, 0.0
      %v695 = vld [vmem:[%s4] sm:$0xf]
      %v696 = vld [vmem:[%s4 + $0x4] sm:$0xf]
      %v697 = vld [vmem:[%s4 + $0x8] sm:$0xf]
      %v698 = vld [vmem:[%s4 + $0xc] sm:$0xf]
      %v699 = vunpack.c.l.bf16 %v695
      %v700 = vunpack.c.l.bf16 %v696
      %v701 = vunpack.c.l.bf16 %v697
      %v702 = vunpack.c.l.bf16 %v698
      %v703 = vld [vmem:[%s5] sm:$0x1]
      %v705 = vlaneseq
      %v706 = vshrl.u32 %v705, 7
      %v707 = vsub.s32 0, %v706
      %v708 = vrot.slane %v703, %v707
      %vm710 = vcmask 261120
      %v712 = vsel %vm710, %v679, 0
      %v715 = vsel %vm710, %v680, 0
      %v718 = vsel %vm710, %v681, 0
      %v721 = vsel %vm710, %v682, 0
      %v724 = vsel %vm710, %v683, 0
      %v727 = vsel %vm710, %v684, 0
      %v730 = vsel %vm710, %v685, 0
      %v733 = vsel %vm710, %v686, 0
      %v736 = vsel %vm710, %v687, 0
      %v739 = vsel %vm710, %v688, 0
      %v742 = vsel %vm710, %v689, 0
      %v745 = vsel %vm710, %v690, 0
      %v748 = vsel %vm710, %v691, 0
      %v751 = vsel %vm710, %v692, 0
      %v754 = vsel %vm710, %v693, 0
      %v757 = vsel %vm710, %v694, 0
      %759 = vmatprep.subr.mxu0 0.0
      %760 = vmatpush1.msra.mxu0 %v699
      %761 = vmatprep.subr.mxu0 0.0
      %762 = vmatpush1.msra.mxu0 %v700
      %763 = vmatprep.subr.mxu0 0.0
      %764 = vmatpush1.msra.mxu0 %v701
      %765 = vmatprep.subr.mxu0 0.0
      %766 = vmatpush1.msra.mxu0 %v702
      %767 = vmatprep.subr.mxu0 0.0
      %768 = vmatpush1.msra.mxu0 0.0
      %769 = vmatprep.subr.mxu0 0.0
      %770 = vmatpush1.msra.mxu0 0.0
      %771 = vmatprep.subr.mxu0 0.0
      %772 = vmatpush1.msra.mxu0 0.0
      %773 = vmatprep.subr.mxu0 0.0
      %774 = vmatpush1.msra.mxu0 0.0
      %775 = vmatprep.subr.mxu0 0.0
      %776 = vmatpush1.msra.mxu0 0.0
      %777 = vmatprep.subr.mxu0 0.0
      %778 = vmatpush1.msra.mxu0 0.0
      %779 = vmatprep.subr.mxu0 0.0
      %780 = vmatpush1.msra.mxu0 0.0
      %781 = vmatprep.subr.mxu0 0.0
      %782 = vmatpush1.msra.mxu0 0.0
      %783 = vmatprep.subr.mxu0 0.0
      %784 = vmatpush1.msra.mxu0 0.0
      %785 = vmatprep.subr.mxu0 0.0
      %786 = vmatpush1.msra.mxu0 0.0
      %787 = vmatprep.subr.mxu0 0.0
      %788 = vmatpush1.msra.mxu0 0.0
      %789 = vmatprep.subr.mxu0 0.0
      %790 = vmatpush1.msra.mxu0 0.0
      %791 = vmatprep.subr.mxu0 0.0
      %792 = vmatpush1.msra.mxu0 0.0
      %793 = vmatprep.subr.mxu0 0.0
      %794 = vmatpush1.msra.mxu0 0.0
      %795 = vmatprep.subr.mxu0 0.0
      %796 = vmatpush1.msra.mxu0 0.0
      %797 = vmatprep.subr.mxu0 0.0
      %798 = vmatpush1.msra.mxu0 0.0
      %799 = vmatprep.subr.mxu0 0.0
      %800 = vmatpush1.msra.mxu0 0.0
      %801 = vmatprep.subr.mxu0 0.0
      %802 = vmatpush1.msra.mxu0 0.0
      %803 = vmatprep.subr.mxu0 0.0
      %804 = vmatpush1.msra.mxu0 0.0
      %805 = vmatprep.subr.mxu0 0.0
      %806 = vmatpush1.msra.mxu0 0.0
      %807 = vmatprep.subr.mxu0 0.0
      %808 = vmatpush1.msra.mxu0 0.0
      %809 = vmatprep.subr.mxu0 0.0
      %810 = vmatpush1.msra.mxu0 0.0
      %811 = vmatprep.subr.mxu0 0.0
      %812 = vmatpush1.msra.mxu0 0.0
      %813 = vmatprep.subr.mxu0 0.0
      %814 = vmatpush1.msra.mxu0 0.0
      %815 = vmatprep.subr.mxu0 0.0
      %816 = vmatpush1.msra.mxu0 0.0
      %817 = vmatprep.subr.mxu0 0.0
      %818 = vmatpush1.msra.mxu0 0.0
      %819 = vmatprep.subr.mxu0 0.0
      %820 = vmatpush1.msra.mxu0 0.0
      %821 = vmatprep.subr.mxu0 0.0
      %822 = vmatpush1.msra.mxu0 0.0
      %823 = vmatprep.mubr.f32.mxu0 0.0
      %824 = vmatmul.mubr.f32.gmra.mrb[0].mxu0 %v712
      %v825 = vpop.f32.mrb[0].mxu0
      %v826 = vadd.f32 %v708, %v825
      %v827 = vpop.f32.mrb[0].mxu0
      %828 = vmatprep.mubr.f32.mxu0 0.0
      %829 = vmatmul.mubr.f32.gmra.mrb[0].mxu0 %v715
      %v830 = vpop.f32.mrb[0].mxu0
      %v831 = vadd.f32 %v708, %v830
      %v832 = vpop.f32.mrb[0].mxu0
      %833 = vmatprep.mubr.f32.mxu0 0.0
      %834 = vmatmul.mubr.f32.gmra.mrb[0].mxu0 %v718
      %v835 = vpop.f32.mrb[0].mxu0
      %v836 = vadd.f32 %v708, %v835
      %v837 = vpop.f32.mrb[0].mxu0
      %838 = vmatprep.mubr.f32.mxu0 0.0
      %839 = vmatmul.mubr.f32.gmra.mrb[0].mxu0 %v721
      %v840 = vpop.f32.mrb[0].mxu0
      %v841 = vadd.f32 %v708, %v840
      %v842 = vpop.f32.mrb[0].mxu0
      %843 = vmatprep.mubr.f32.mxu0 0.0
      %844 = vmatmul.mubr.f32.gmra.mrb[0].mxu0 %v724
      %v845 = vpop.f32.mrb[0].mxu0
      %v846 = vadd.f32 %v708, %v845
      %v847 = vpop.f32.mrb[0].mxu0
      %848 = vmatprep.mubr.f32.mxu0 0.0
      %849 = vmatmul.mubr.f32.gmra.mrb[0].mxu0 %v727
      %v850 = vpop.f32.mrb[0].mxu0
      %v851 = vadd.f32 %v708, %v850
      %v852 = vpop.f32.mrb[0].mxu0
      %853 = vmatprep.mubr.f32.mxu0 0.0
      %854 = vmatmul.mubr.f32.gmra.mrb[0].mxu0 %v730
      %v855 = vpop.f32.mrb[0].mxu0
      %v856 = vadd.f32 %v708, %v855
      %v857 = vpop.f32.mrb[0].mxu0
      %858 = vmatprep.mubr.f32.mxu0 0.0
      %859 = vmatmul.mubr.f32.gmra.mrb[0].mxu0 %v733
      %v860 = vpop.f32.mrb[0].mxu0
      %v861 = vadd.f32 %v708, %v860
      %v862 = vpop.f32.mrb[0].mxu0
      %863 = vmatprep.mubr.f32.mxu0 0.0
      %864 = vmatmul.mubr.f32.gmra.mrb[0].mxu0 %v736
      %v865 = vpop.f32.mrb[0].mxu0
      %v866 = vadd.f32 %v708, %v865
      %v867 = vpop.f32.mrb[0].mxu0
      %868 = vmatprep.mubr.f32.mxu0 0.0
      %869 = vmatmul.mubr.f32.gmra.mrb[0].mxu0 %v739
      %v870 = vpop.f32.mrb[0].mxu0
      %v871 = vadd.f32 %v708, %v870
      %v872 = vpop.f32.mrb[0].mxu0
      %873 = vmatprep.mubr.f32.mxu0 0.0
      %874 = vmatmul.mubr.f32.gmra.mrb[0].mxu0 %v742
      %v875 = vpop.f32.mrb[0].mxu0
      %v876 = vadd.f32 %v708, %v875
      %v877 = vpop.f32.mrb[0].mxu0
      %878 = vmatprep.mubr.f32.mxu0 0.0
      %879 = vmatmul.mubr.f32.gmra.mrb[0].mxu0 %v745
      %v880 = vpop.f32.mrb[0].mxu0
      %v881 = vadd.f32 %v708, %v880
      %v882 = vpop.f32.mrb[0].mxu0
      %883 = vmatprep.mubr.f32.mxu0 0.0
      %884 = vmatmul.mubr.f32.gmra.mrb[0].mxu0 %v748
      %v885 = vpop.f32.mrb[0].mxu0
      %v886 = vadd.f32 %v708, %v885
      %v887 = vpop.f32.mrb[0].mxu0
      %888 = vmatprep.mubr.f32.mxu0 0.0
      %889 = vmatmul.mubr.f32.gmra.mrb[0].mxu0 %v751
      %v890 = vpop.f32.mrb[0].mxu0
      %v891 = vadd.f32 %v708, %v890
      %v892 = vpop.f32.mrb[0].mxu0
      %893 = vmatprep.mubr.f32.mxu0 0.0
      %894 = vmatmul.mubr.f32.gmra.mrb[0].mxu0 %v754
      %v895 = vpop.f32.mrb[0].mxu0
      %v896 = vadd.f32 %v708, %v895
      %v897 = vpop.f32.mrb[0].mxu0
      %898 = vmatprep.mubr.f32.mxu0 0.0
      %899 = vmatmul.mubr.f32.gmra.mrb[0].mxu0 %v757
      %v900 = vpop.f32.mrb[0].mxu0
      %v901 = vadd.f32 %v708, %v900
      %v902 = vpop.f32.mrb[0].mxu0
      %903 = vdwg.mxu0
      %v904 = vmax.f32 %v826, 0.0
      %v905 = vmax.f32 %v831, 0.0
      %v906 = vmax.f32 %v836, 0.0
      %v907 = vmax.f32 %v841, 0.0
      %v908 = vmax.f32 %v846, 0.0
      %v909 = vmax.f32 %v851, 0.0
      %v910 = vmax.f32 %v856, 0.0
      %v911 = vmax.f32 %v861, 0.0
      %v912 = vmax.f32 %v866, 0.0
      %v913 = vmax.f32 %v871, 0.0
      %v914 = vmax.f32 %v876, 0.0
      %v915 = vmax.f32 %v881, 0.0
      %v916 = vmax.f32 %v886, 0.0
      %v917 = vmax.f32 %v891, 0.0
      %v918 = vmax.f32 %v896, 0.0
      %v919 = vmax.f32 %v901, 0.0
      %v920 = vsub.f32 0.0, %v826
      %v921 = vsub.f32 0.0, %v831
      %v922 = vsub.f32 0.0, %v836
      %v923 = vsub.f32 0.0, %v841
      %v924 = vsub.f32 0.0, %v846
      %v925 = vsub.f32 0.0, %v851
      %v926 = vsub.f32 0.0, %v856
      %v927 = vsub.f32 0.0, %v861
      %v928 = vsub.f32 0.0, %v866
      %v929 = vsub.f32 0.0, %v871
      %v930 = vsub.f32 0.0, %v876
      %v931 = vsub.f32 0.0, %v881
      %v932 = vsub.f32 0.0, %v886
      %v933 = vsub.f32 0.0, %v891
      %v934 = vsub.f32 0.0, %v896
      %v935 = vsub.f32 0.0, %v901
      %v936 = vmul.f32 %v920, 1.442695
      %v937 = vpow.pop %v936
      %v938 = vmul.f32 %v921, 1.442695
      %v939 = vpow.pop %v938
      %v940 = vmul.f32 %v922, 1.442695
      %v941 = vpow.pop %v940
      %v942 = vmul.f32 %v923, 1.442695
      %v943 = vpow.pop %v942
      %v944 = vmul.f32 %v924, 1.442695
      %v945 = vpow.pop %v944
      %v946 = vmul.f32 %v925, 1.442695
      %v947 = vpow.pop %v946
      %v948 = vmul.f32 %v926, 1.442695
      %v949 = vpow.pop %v948
      %v950 = vmul.f32 %v927, 1.442695
      %v951 = vpow.pop %v950
      %v952 = vmul.f32 %v928, 1.442695
      %v953 = vpow.pop %v952
      %v954 = vmul.f32 %v929, 1.442695
      %v955 = vpow.pop %v954
      %v956 = vmul.f32 %v930, 1.442695
      %v957 = vpow.pop %v956
      %v958 = vmul.f32 %v931, 1.442695
      %v959 = vpow.pop %v958
      %v960 = vmul.f32 %v932, 1.442695
      %v961 = vpow.pop %v960
      %v962 = vmul.f32 %v933, 1.442695
      %v963 = vpow.pop %v962
      %v964 = vmul.f32 %v934, 1.442695
      %v965 = vpow.pop %v964
      %v966 = vmul.f32 %v935, 1.442695
      %v967 = vpow.pop %v966
      %v968 = vadd.f32 %v937, 1.0
      %v969 = vadd.f32 %v939, 1.0
      %v970 = vadd.f32 %v941, 1.0
      %v971 = vadd.f32 %v943, 1.0
      %v972 = vadd.f32 %v945, 1.0
      %v973 = vadd.f32 %v947, 1.0
      %v974 = vadd.f32 %v949, 1.0
      %v975 = vadd.f32 %v951, 1.0
      %v976 = vadd.f32 %v953, 1.0
      %v977 = vadd.f32 %v955, 1.0
      %v978 = vadd.f32 %v957, 1.0
      %v979 = vadd.f32 %v959, 1.0
      %v980 = vadd.f32 %v961, 1.0
      %v981 = vadd.f32 %v963, 1.0
      %v982 = vadd.f32 %v965, 1.0
      %v983 = vadd.f32 %v967, 1.0
      %v984 = vrcp.pop %v968
      %v985 = vrcp.pop %v969
      %v986 = vrcp.pop %v970
      %v987 = vrcp.pop %v971
      %v988 = vrcp.pop %v972
      %v989 = vrcp.pop %v973
      %v990 = vrcp.pop %v974
      %v991 = vrcp.pop %v975
      %v992 = vrcp.pop %v976
      %v993 = vrcp.pop %v977
      %v994 = vrcp.pop %v978
      %v995 = vrcp.pop %v979
      %v996 = vrcp.pop %v980
      %v997 = vrcp.pop %v981
      %v998 = vrcp.pop %v982
      %v999 = vrcp.pop %v983
      %1016 = vrot.lane.b32.xlu0 %v332, 32
      %v1017 = vpop.permute.xlu0 %1016
      %1018 = vrot.lane.b32.xlu0 %v333, 32
      %v1019 = vpop.permute.xlu0 %1018
      %1020 = vrot.lane.b32.xlu0 %v334, 32
      %v1021 = vpop.permute.xlu0 %1020
      %1022 = vrot.lane.b32.xlu0 %v335, 32
      %v1023 = vpop.permute.xlu0 %1022
      %1024 = vrot.lane.b32.xlu0 %v336, 32
      %v1025 = vpop.permute.xlu0 %1024
      %1026 = vrot.lane.b32.xlu0 %v337, 32
      %v1027 = vpop.permute.xlu0 %1026
      %1028 = vrot.lane.b32.xlu0 %v338, 32
      %v1029 = vpop.permute.xlu0 %1028
      %1030 = vrot.lane.b32.xlu0 %v339, 32
      %v1031 = vpop.permute.xlu0 %1030
      %1032 = vrot.lane.b32.xlu0 %v340, 32
      %v1033 = vpop.permute.xlu0 %1032
      %1034 = vrot.lane.b32.xlu0 %v341, 32
      %v1035 = vpop.permute.xlu0 %1034
      %1036 = vrot.lane.b32.xlu0 %v342, 32
      %v1037 = vpop.permute.xlu0 %1036
      %1038 = vrot.lane.b32.xlu0 %v343, 32
      %v1039 = vpop.permute.xlu0 %1038
      %1040 = vrot.lane.b32.xlu0 %v344, 32
      %v1041 = vpop.permute.xlu0 %1040
      %1042 = vrot.lane.b32.xlu0 %v345, 32
      %v1043 = vpop.permute.xlu0 %1042
      %1044 = vrot.lane.b32.xlu0 %v346, 32
      %v1045 = vpop.permute.xlu0 %1044
      %1046 = vrot.lane.b32.xlu0 %v347, 32
      %v1047 = vpop.permute.xlu0 %1046
      %v1064 = vmul.f32 %v984, %v1017
      %v1065 = vmul.f32 %v985, %v1019
      %v1066 = vmul.f32 %v986, %v1021
      %v1067 = vmul.f32 %v987, %v1023
      %v1068 = vmul.f32 %v988, %v1025
      %v1069 = vmul.f32 %v989, %v1027
      %v1070 = vmul.f32 %v990, %v1029
      %v1071 = vmul.f32 %v991, %v1031
      %v1072 = vmul.f32 %v992, %v1033
      %v1073 = vmul.f32 %v993, %v1035
      %v1074 = vmul.f32 %v994, %v1037
      %v1075 = vmul.f32 %v995, %v1039
      %v1076 = vmul.f32 %v996, %v1041
      %v1077 = vmul.f32 %v997, %v1043
      %v1078 = vmul.f32 %v998, %v1045
      %v1079 = vmul.f32 %v999, %v1047
      %1081 = vset.pattern.permute.xlu0 32
      %1082 = vperm.xlu0 %1081, %v1064
      %v1083 = vpop.permute.xlu0 %1082
      %1086 = vset.pattern.permute.xlu0 32
      %1087 = vperm.xlu0 %1086, %v1065
      %v1088 = vpop.permute.xlu0 %1087
      %1091 = vset.pattern.permute.xlu0 32
      %1092 = vperm.xlu0 %1091, %v1066
      %v1093 = vpop.permute.xlu0 %1092
      %1096 = vset.pattern.permute.xlu0 32
      %1097 = vperm.xlu0 %1096, %v1067
      %v1098 = vpop.permute.xlu0 %1097
      %1101 = vset.pattern.permute.xlu0 32
      %1102 = vperm.xlu0 %1101, %v1068
      %v1103 = vpop.permute.xlu0 %1102
      %1106 = vset.pattern.permute.xlu0 32
      %1107 = vperm.xlu0 %1106, %v1069
      %v1108 = vpop.permute.xlu0 %1107
      %1111 = vset.pattern.permute.xlu0 32
      %1112 = vperm.xlu0 %1111, %v1070
      %v1113 = vpop.permute.xlu0 %1112
      %1116 = vset.pattern.permute.xlu0 32
      %1117 = vperm.xlu0 %1116, %v1071
      %v1118 = vpop.permute.xlu0 %1117
      %1121 = vset.pattern.permute.xlu0 32
      %1122 = vperm.xlu0 %1121, %v1072
      %v1123 = vpop.permute.xlu0 %1122
      %1126 = vset.pattern.permute.xlu0 32
      %1127 = vperm.xlu0 %1126, %v1073
      %v1128 = vpop.permute.xlu0 %1127
      %1131 = vset.pattern.permute.xlu0 32
      %1132 = vperm.xlu0 %1131, %v1074
      %v1133 = vpop.permute.xlu0 %1132
      %1136 = vset.pattern.permute.xlu0 32
      %1137 = vperm.xlu0 %1136, %v1075
      %v1138 = vpop.permute.xlu0 %1137
      %1141 = vset.pattern.permute.xlu0 32
      %1142 = vperm.xlu0 %1141, %v1076
      %v1143 = vpop.permute.xlu0 %1142
      %1146 = vset.pattern.permute.xlu0 32
      %1147 = vperm.xlu0 %1146, %v1077
      %v1148 = vpop.permute.xlu0 %1147
      %1151 = vset.pattern.permute.xlu0 32
      %1152 = vperm.xlu0 %1151, %v1078
      %v1153 = vpop.permute.xlu0 %1152
      %1156 = vset.pattern.permute.xlu0 32
      %1157 = vperm.xlu0 %1156, %v1079
      %v1158 = vpop.permute.xlu0 %1157
      %v1160 = vmul.f32 %v1083, %v904
      %v1161 = vmul.f32 %v1088, %v905
      %v1162 = vmul.f32 %v1093, %v906
      %v1163 = vmul.f32 %v1098, %v907
      %v1164 = vmul.f32 %v1103, %v908
      %v1165 = vmul.f32 %v1108, %v909
      %v1166 = vmul.f32 %v1113, %v910
      %v1167 = vmul.f32 %v1118, %v911
      %v1168 = vmul.f32 %v1123, %v912
      %v1169 = vmul.f32 %v1128, %v913
      %v1170 = vmul.f32 %v1133, %v914
      %v1171 = vmul.f32 %v1138, %v915
      %v1172 = vmul.f32 %v1143, %v916
      %v1173 = vmul.f32 %v1148, %v917
      %v1174 = vmul.f32 %v1153, %v918
      %v1175 = vmul.f32 %v1158, %v919
      %v1176 = vsel %vm710, %v1160, 0.0
      %v1177 = vrot.slane %v1176, 4
      %v1178 = vadd.f32 %v1176, %v1177
      %v1179 = vrot.slane %v1178, 2
      %v1180 = vadd.f32 %v1178, %v1179
      %v1181 = vrot.slane %v1180, 1
      %v1182 = vadd.f32 %v1180, %v1181
      %v1183 = vsel %vm710, %v1161, 0.0
      %v1184 = vrot.slane %v1183, 4
      %v1185 = vadd.f32 %v1183, %v1184
      %v1186 = vrot.slane %v1185, 2
      %v1187 = vadd.f32 %v1185, %v1186
      %v1188 = vrot.slane %v1187, 1
      %v1189 = vadd.f32 %v1187, %v1188
      %v1190 = vsel %vm710, %v1162, 0.0
      %v1191 = vrot.slane %v1190, 4
      %v1192 = vadd.f32 %v1190, %v1191
      %v1193 = vrot.slane %v1192, 2
      %v1194 = vadd.f32 %v1192, %v1193
      %v1195 = vrot.slane %v1194, 1
      %v1196 = vadd.f32 %v1194, %v1195
      %v1197 = vsel %vm710, %v1163, 0.0
      %v1198 = vrot.slane %v1197, 4
      %v1199 = vadd.f32 %v1197, %v1198
      %v1200 = vrot.slane %v1199, 2
      %v1201 = vadd.f32 %v1199, %v1200
      %v1202 = vrot.slane %v1201, 1
      %v1203 = vadd.f32 %v1201, %v1202
      %v1204 = vsel %vm710, %v1164, 0.0
      %v1205 = vrot.slane %v1204, 4
      %v1206 = vadd.f32 %v1204, %v1205
      %v1207 = vrot.slane %v1206, 2
      %v1208 = vadd.f32 %v1206, %v1207
      %v1209 = vrot.slane %v1208, 1
      %v1210 = vadd.f32 %v1208, %v1209
      %v1211 = vsel %vm710, %v1165, 0.0
      %v1212 = vrot.slane %v1211, 4
      %v1213 = vadd.f32 %v1211, %v1212
      %v1214 = vrot.slane %v1213, 2
      %v1215 = vadd.f32 %v1213, %v1214
      %v1216 = vrot.slane %v1215, 1
      %v1217 = vadd.f32 %v1215, %v1216
      %v1218 = vsel %vm710, %v1166, 0.0
      %v1219 = vrot.slane %v1218, 4
      %v1220 = vadd.f32 %v1218, %v1219
      %v1221 = vrot.slane %v1220, 2
      %v1222 = vadd.f32 %v1220, %v1221
      %v1223 = vrot.slane %v1222, 1
      %v1224 = vadd.f32 %v1222, %v1223
      %v1225 = vsel %vm710, %v1167, 0.0
      %v1226 = vrot.slane %v1225, 4
      %v1227 = vadd.f32 %v1225, %v1226
      %v1228 = vrot.slane %v1227, 2
      %v1229 = vadd.f32 %v1227, %v1228
      %v1230 = vrot.slane %v1229, 1
      %v1231 = vadd.f32 %v1229, %v1230
      %v1232 = vsel %vm710, %v1168, 0.0
      %v1233 = vrot.slane %v1232, 4
      %v1234 = vadd.f32 %v1232, %v1233
      %v1235 = vrot.slane %v1234, 2
      %v1236 = vadd.f32 %v1234, %v1235
      %v1237 = vrot.slane %v1236, 1
      %v1238 = vadd.f32 %v1236, %v1237
      %v1239 = vsel %vm710, %v1169, 0.0
      %v1240 = vrot.slane %v1239, 4
      %v1241 = vadd.f32 %v1239, %v1240
      %v1242 = vrot.slane %v1241, 2
      %v1243 = vadd.f32 %v1241, %v1242
      %v1244 = vrot.slane %v1243, 1
      %v1245 = vadd.f32 %v1243, %v1244
      %v1246 = vsel %vm710, %v1170, 0.0
      %v1247 = vrot.slane %v1246, 4
      %v1248 = vadd.f32 %v1246, %v1247
      %v1249 = vrot.slane %v1248, 2
      %v1250 = vadd.f32 %v1248, %v1249
      %v1251 = vrot.slane %v1250, 1
      %v1252 = vadd.f32 %v1250, %v1251
      %v1253 = vsel %vm710, %v1171, 0.0
      %v1254 = vrot.slane %v1253, 4
      %v1255 = vadd.f32 %v1253, %v1254
      %v1256 = vrot.slane %v1255, 2
      %v1257 = vadd.f32 %v1255, %v1256
      %v1258 = vrot.slane %v1257, 1
      %v1259 = vadd.f32 %v1257, %v1258
      %v1260 = vsel %vm710, %v1172, 0.0
      %v1261 = vrot.slane %v1260, 4
      %v1262 = vadd.f32 %v1260, %v1261
      %v1263 = vrot.slane %v1262, 2
      %v1264 = vadd.f32 %v1262, %v1263
      %v1265 = vrot.slane %v1264, 1
      %v1266 = vadd.f32 %v1264, %v1265
      %v1267 = vsel %vm710, %v1173, 0.0
      %v1268 = vrot.slane %v1267, 4
      %v1269 = vadd.f32 %v1267, %v1268
      %v1270 = vrot.slane %v1269, 2
      %v1271 = vadd.f32 %v1269, %v1270
      %v1272 = vrot.slane %v1271, 1
      %v1273 = vadd.f32 %v1271, %v1272
      %v1274 = vsel %vm710, %v1174, 0.0
      %v1275 = vrot.slane %v1274, 4
      %v1276 = vadd.f32 %v1274, %v1275
      %v1277 = vrot.slane %v1276, 2
      %v1278 = vadd.f32 %v1276, %v1277
      %v1279 = vrot.slane %v1278, 1
      %v1280 = vadd.f32 %v1278, %v1279
      %v1281 = vsel %vm710, %v1175, 0.0
      %v1282 = vrot.slane %v1281, 4
      %v1283 = vadd.f32 %v1281, %v1282
      %v1284 = vrot.slane %v1283, 2
      %v1285 = vadd.f32 %v1283, %v1284
      %v1286 = vrot.slane %v1285, 1
      %v1287 = vadd.f32 %v1285, %v1286
      %v1288 = vsel %vm710, %v1160, -inf
      %v1289 = vrot.slane %v1288, 4
      %v1290 = vmax.f32 %v1288, %v1289
      %v1291 = vrot.slane %v1290, 2
      %v1292 = vmax.f32 %v1290, %v1291
      %v1293 = vrot.slane %v1292, 1
      %v1294 = vmax.f32 %v1292, %v1293
      %v1295 = vsel %vm710, %v1161, -inf
      %v1296 = vrot.slane %v1295, 4
      %v1297 = vmax.f32 %v1295, %v1296
      %v1298 = vrot.slane %v1297, 2
      %v1299 = vmax.f32 %v1297, %v1298
      %v1300 = vrot.slane %v1299, 1
      %v1301 = vmax.f32 %v1299, %v1300
      %v1302 = vsel %vm710, %v1162, -inf
      %v1303 = vrot.slane %v1302, 4
      %v1304 = vmax.f32 %v1302, %v1303
      %v1305 = vrot.slane %v1304, 2
      %v1306 = vmax.f32 %v1304, %v1305
      %v1307 = vrot.slane %v1306, 1
      %v1308 = vmax.f32 %v1306, %v1307
      %v1309 = vsel %vm710, %v1163, -inf
      %v1310 = vrot.slane %v1309, 4
      %v1311 = vmax.f32 %v1309, %v1310
      %v1312 = vrot.slane %v1311, 2
      %v1313 = vmax.f32 %v1311, %v1312
      %v1314 = vrot.slane %v1313, 1
      %v1315 = vmax.f32 %v1313, %v1314
      %v1316 = vsel %vm710, %v1164, -inf
      %v1317 = vrot.slane %v1316, 4
      %v1318 = vmax.f32 %v1316, %v1317
      %v1319 = vrot.slane %v1318, 2
      %v1320 = vmax.f32 %v1318, %v1319
      %v1321 = vrot.slane %v1320, 1
      %v1322 = vmax.f32 %v1320, %v1321
      %v1323 = vsel %vm710, %v1165, -inf
      %v1324 = vrot.slane %v1323, 4
      %v1325 = vmax.f32 %v1323, %v1324
      %v1326 = vrot.slane %v1325, 2
      %v1327 = vmax.f32 %v1325, %v1326
      %v1328 = vrot.slane %v1327, 1
      %v1329 = vmax.f32 %v1327, %v1328
      %v1330 = vsel %vm710, %v1166, -inf
      %v1331 = vrot.slane %v1330, 4
      %v1332 = vmax.f32 %v1330, %v1331
      %v1333 = vrot.slane %v1332, 2
      %v1334 = vmax.f32 %v1332, %v1333
      %v1335 = vrot.slane %v1334, 1
      %v1336 = vmax.f32 %v1334, %v1335
      %v1337 = vsel %vm710, %v1167, -inf
      %v1338 = vrot.slane %v1337, 4
      %v1339 = vmax.f32 %v1337, %v1338
      %v1340 = vrot.slane %v1339, 2
      %v1341 = vmax.f32 %v1339, %v1340
      %v1342 = vrot.slane %v1341, 1
      %v1343 = vmax.f32 %v1341, %v1342
      %v1344 = vsel %vm710, %v1168, -inf
      %v1345 = vrot.slane %v1344, 4
      %v1346 = vmax.f32 %v1344, %v1345
      %v1347 = vrot.slane %v1346, 2
      %v1348 = vmax.f32 %v1346, %v1347
      %v1349 = vrot.slane %v1348, 1
      %v1350 = vmax.f32 %v1348, %v1349
      %v1351 = vsel %vm710, %v1169, -inf
      %v1352 = vrot.slane %v1351, 4
      %v1353 = vmax.f32 %v1351, %v1352
      %v1354 = vrot.slane %v1353, 2
      %v1355 = vmax.f32 %v1353, %v1354
      %v1356 = vrot.slane %v1355, 1
      %v1357 = vmax.f32 %v1355, %v1356
      %v1358 = vsel %vm710, %v1170, -inf
      %v1359 = vrot.slane %v1358, 4
      %v1360 = vmax.f32 %v1358, %v1359
      %v1361 = vrot.slane %v1360, 2
      %v1362 = vmax.f32 %v1360, %v1361
      %v1363 = vrot.slane %v1362, 1
      %v1364 = vmax.f32 %v1362, %v1363
      %v1365 = vsel %vm710, %v1171, -inf
      %v1366 = vrot.slane %v1365, 4
      %v1367 = vmax.f32 %v1365, %v1366
      %v1368 = vrot.slane %v1367, 2
      %v1369 = vmax.f32 %v1367, %v1368
      %v1370 = vrot.slane %v1369, 1
      %v1371 = vmax.f32 %v1369, %v1370
      %v1372 = vsel %vm710, %v1172, -inf
      %v1373 = vrot.slane %v1372, 4
      %v1374 = vmax.f32 %v1372, %v1373
      %v1375 = vrot.slane %v1374, 2
      %v1376 = vmax.f32 %v1374, %v1375
      %v1377 = vrot.slane %v1376, 1
      %v1378 = vmax.f32 %v1376, %v1377
      %v1379 = vsel %vm710, %v1173, -inf
      %v1380 = vrot.slane %v1379, 4
      %v1381 = vmax.f32 %v1379, %v1380
      %v1382 = vrot.slane %v1381, 2
      %v1383 = vmax.f32 %v1381, %v1382
      %v1384 = vrot.slane %v1383, 1
      %v1385 = vmax.f32 %v1383, %v1384
      %v1386 = vsel %vm710, %v1174, -inf
      %v1387 = vrot.slane %v1386, 4
      %v1388 = vmax.f32 %v1386, %v1387
      %v1389 = vrot.slane %v1388, 2
      %v1390 = vmax.f32 %v1388, %v1389
      %v1391 = vrot.slane %v1390, 1
      %v1392 = vmax.f32 %v1390, %v1391
      %v1393 = vsel %vm710, %v1175, -inf
      %v1394 = vrot.slane %v1393, 4
      %v1395 = vmax.f32 %v1393, %v1394
      %v1396 = vrot.slane %v1395, 2
      %v1397 = vmax.f32 %v1395, %v1396
      %v1398 = vrot.slane %v1397, 1
      %v1399 = vmax.f32 %v1397, %v1398
      %v1400 = vmul.f32 %v1182, %v1294
      %v1401 = vmul.f32 %v1189, %v1301
      %v1402 = vmul.f32 %v1196, %v1308
      %v1403 = vmul.f32 %v1203, %v1315
      %v1404 = vmul.f32 %v1210, %v1322
      %v1405 = vmul.f32 %v1217, %v1329
      %v1406 = vmul.f32 %v1224, %v1336
      %v1407 = vmul.f32 %v1231, %v1343
      %v1408 = vmul.f32 %v1238, %v1350
      %v1409 = vmul.f32 %v1245, %v1357
      %v1410 = vmul.f32 %v1252, %v1364
      %v1411 = vmul.f32 %v1259, %v1371
      %v1412 = vmul.f32 %v1266, %v1378
      %v1413 = vmul.f32 %v1273, %v1385
      %v1414 = vmul.f32 %v1280, %v1392
      %v1415 = vmul.f32 %v1287, %v1399
      %vm1432 = vcmask 1041409
      %v1433 = vsel %vm1432, %v1401, %v1400
      %vm1434 = vcmask 1042434
      %v1435 = vsel %vm1434, %v1402, %v1433
      %vm1436 = vcmask 1043459
      %v1437 = vsel %vm1436, %v1403, %v1435
      %vm1438 = vcmask 1044484
      %v1439 = vsel %vm1438, %v1404, %v1437
      %vm1440 = vcmask 1045509
      %v1441 = vsel %vm1440, %v1405, %v1439
      %vm1442 = vcmask 1046534
      %v1443 = vsel %vm1442, %v1406, %v1441
      %vm1444 = vcmask 1047559
      %v1445 = vsel %vm1444, %v1407, %v1443
      %v1446 = vsel %vm1432, %v1409, %v1408
      %v1447 = vsel %vm1434, %v1410, %v1446
      %v1448 = vsel %vm1436, %v1411, %v1447
      %v1449 = vsel %vm1438, %v1412, %v1448
      %v1450 = vsel %vm1440, %v1413, %v1449
      %v1451 = vsel %vm1442, %v1414, %v1450
      %v1452 = vsel %vm1444, %v1415, %v1451
      %1455 = vst.msk [vmem:[%s297] sm:$0xff] %vm710, %v1445
      %1456 = vst.msk [vmem:[%s297 + $0x8] sm:$0xff] %vm710, %v1452
      %s1457 = scalar_lea.vmem %s285, 64
      %v1458 = vld [vmem:[%s1457] sm:$0xf]
      %v1459 = vld [vmem:[%s1457 + $0x4] sm:$0xf]
      %v1460 = vld [vmem:[%s1457 + $0x8] sm:$0xf]
      %v1461 = vld [vmem:[%s1457 + $0xc] sm:$0xf]
      %v1462 = vld [vmem:[%s1457 + $0x10] sm:$0xf]
      %v1463 = vld [vmem:[%s1457 + $0x14] sm:$0xf]
      %v1464 = vld [vmem:[%s1457 + $0x18] sm:$0xf]
      %v1465 = vld [vmem:[%s1457 + $0x1c] sm:$0xf]
      %v1466 = vld [vmem:[%s1457 + $0x20] sm:$0xf]
      %v1467 = vld [vmem:[%s1457 + $0x24] sm:$0xf]
      %v1468 = vld [vmem:[%s1457 + $0x28] sm:$0xf]
      %v1469 = vld [vmem:[%s1457 + $0x2c] sm:$0xf]
      %v1470 = vld [vmem:[%s1457 + $0x30] sm:$0xf]
      %v1471 = vld [vmem:[%s1457 + $0x34] sm:$0xf]
      %v1472 = vld [vmem:[%s1457 + $0x38] sm:$0xf]
      %v1473 = vld [vmem:[%s1457 + $0x3c] sm:$0xf]
      %s1474 = scalar_lea.vmem %s279, 64
      %v1475 = vld [vmem:[%s1474] sm:$0xf]
      %v1476 = vld [vmem:[%s1474 + $0x4] sm:$0xf]
      %v1477 = vld [vmem:[%s1474 + $0x8] sm:$0xf]
      %v1478 = vld [vmem:[%s1474 + $0xc] sm:$0xf]
      %v1479 = vld [vmem:[%s1474 + $0x10] sm:$0xf]
      %v1480 = vld [vmem:[%s1474 + $0x14] sm:$0xf]
      %v1481 = vld [vmem:[%s1474 + $0x18] sm:$0xf]
      %v1482 = vld [vmem:[%s1474 + $0x1c] sm:$0xf]
      %v1483 = vld [vmem:[%s1474 + $0x20] sm:$0xf]
      %v1484 = vld [vmem:[%s1474 + $0x24] sm:$0xf]
      %v1485 = vld [vmem:[%s1474 + $0x28] sm:$0xf]
      %v1486 = vld [vmem:[%s1474 + $0x2c] sm:$0xf]
      %v1487 = vld [vmem:[%s1474 + $0x30] sm:$0xf]
      %v1488 = vld [vmem:[%s1474 + $0x34] sm:$0xf]
      %v1489 = vld [vmem:[%s1474 + $0x38] sm:$0xf]
      %v1490 = vld [vmem:[%s1474 + $0x3c] sm:$0xf]
      %s1491 = scalar_lea.vmem %s291, 128
      %v1492 = vld [vmem:[%s1491] sm:$0xff]
      %v1493 = vld [vmem:[%s1491 + $0x8] sm:$0xff]
      %v1494 = vld [vmem:[%s1491 + $0x10] sm:$0xff]
      %v1495 = vld [vmem:[%s1491 + $0x18] sm:$0xff]
      %v1496 = vld [vmem:[%s1491 + $0x20] sm:$0xff]
      %v1497 = vld [vmem:[%s1491 + $0x28] sm:$0xff]
      %v1498 = vld [vmem:[%s1491 + $0x30] sm:$0xff]
      %v1499 = vld [vmem:[%s1491 + $0x38] sm:$0xff]
      %v1500 = vld [vmem:[%s1491 + $0x40] sm:$0xff]
      %v1501 = vld [vmem:[%s1491 + $0x48] sm:$0xff]
      %v1502 = vld [vmem:[%s1491 + $0x50] sm:$0xff]
      %v1503 = vld [vmem:[%s1491 + $0x58] sm:$0xff]
      %v1504 = vld [vmem:[%s1491 + $0x60] sm:$0xff]
      %v1505 = vld [vmem:[%s1491 + $0x68] sm:$0xff]
      %v1506 = vld [vmem:[%s1491 + $0x70] sm:$0xff]
      %v1507 = vld [vmem:[%s1491 + $0x78] sm:$0xff]
      %v1508 = vld [vmem:[%s3] sm:$0xf]
      %v1509 = vld [vmem:[%s3 + $0x4] sm:$0xf]
      %v1526 = vunpack.c.l.b16 %v1458
      %v1527 = vunpack.c.l.b16 %v1459
      %v1528 = vunpack.c.l.b16 %v1460
      %v1529 = vunpack.c.l.b16 %v1461
      %v1530 = vunpack.c.l.b16 %v1462
      %v1531 = vunpack.c.l.b16 %v1463
      %v1532 = vunpack.c.l.b16 %v1464
      %v1533 = vunpack.c.l.b16 %v1465
      %v1534 = vunpack.c.l.b16 %v1466
      %v1535 = vunpack.c.l.b16 %v1467
      %v1536 = vunpack.c.l.b16 %v1468
      %v1537 = vunpack.c.l.b16 %v1469
      %v1538 = vunpack.c.l.b16 %v1470
      %v1539 = vunpack.c.l.b16 %v1471
      %v1540 = vunpack.c.l.b16 %v1472
      %v1541 = vunpack.c.l.b16 %v1473
      %v1542 = vpack.c.b16 %v1527, %v1526
      %v1543 = vpack.c.b16 %v1529, %v1528
      %v1544 = vpack.c.b16 %v1531, %v1530
      %v1545 = vpack.c.b16 %v1533, %v1532
      %v1546 = vpack.c.b16 %v1535, %v1534
      %v1547 = vpack.c.b16 %v1537, %v1536
      %v1548 = vpack.c.b16 %v1539, %v1538
      %v1549 = vpack.c.b16 %v1541, %v1540
      %v1552 = vunpack.c.l.b16 %v1508
      %v1553 = vunpack.c.l.b16 %v1509
      %v1554 = vpack.c.b16 %v1553, %v1552
      %v1557 = vsel %vm396, %v1542, 0
      %v1560 = vsel %vm396, %v1543, 0
      %v1563 = vsel %vm396, %v1544, 0
      %v1566 = vsel %vm396, %v1545, 0
      %v1569 = vsel %vm396, %v1546, 0
      %v1572 = vsel %vm396, %v1547, 0
      %v1575 = vsel %vm396, %v1548, 0
      %v1578 = vsel %vm396, %v1549, 0
      %1580 = vmatprep.subr.bf16.mxu0 0
      %1581 = vmatpush1.bf16.msra.mxu0 %v1554
      %1582 = vmatprep.subr.bf16.mxu0 0
      %1583 = vmatpush1.bf16.msra.mxu0 0
      %1584 = vmatprep.subr.bf16.mxu0 0
      %1585 = vmatpush1.bf16.msra.mxu0 0
      %1586 = vmatprep.subr.bf16.mxu0 0
      %1587 = vmatpush1.bf16.msra.mxu0 0
      %1588 = vmatprep.subr.bf16.mxu0 0
      %1589 = vmatpush1.bf16.msra.mxu0 0
      %1590 = vmatprep.subr.bf16.mxu0 0
      %1591 = vmatpush1.bf16.msra.mxu0 0
      %1592 = vmatprep.subr.bf16.mxu0 0
      %1593 = vmatpush1.bf16.msra.mxu0 0
      %1594 = vmatprep.subr.bf16.mxu0 0
      %1595 = vmatpush1.bf16.msra.mxu0 0
      %1596 = vmatprep.subr.bf16.mxu0 0
      %1597 = vmatpush1.bf16.msra.mxu0 0
      %1598 = vmatprep.subr.bf16.mxu0 0
      %1599 = vmatpush1.bf16.msra.mxu0 0
      %1600 = vmatprep.subr.bf16.mxu0 0
      %1601 = vmatpush1.bf16.msra.mxu0 0
      %1602 = vmatprep.subr.bf16.mxu0 0
      %1603 = vmatpush1.bf16.msra.mxu0 0
      %1604 = vmatprep.subr.bf16.mxu0 0
      %1605 = vmatpush1.bf16.msra.mxu0 0
      %1606 = vmatprep.subr.bf16.mxu0 0
      %1607 = vmatpush1.bf16.msra.mxu0 0
      %1608 = vmatprep.subr.bf16.mxu0 0
      %1609 = vmatpush1.bf16.msra.mxu0 0
      %1610 = vmatprep.subr.bf16.mxu0 0
      %1611 = vmatpush1.bf16.msra.mxu0 0
      %1612 = vmatprep.mubr.bf16.mxu0 0
      %1613 = vmatmul.mubr.bf16.gmra.mrb[0].mxu0 %v1557
      %v1614 = vpop.f32.mrb[0].mxu0
      %v1615 = vadd.f32 0.0, %v1614
      %v1616 = vpop.f32.mrb[0].mxu0
      %v1617 = vpop.f32.mrb[0].mxu0
      %v1618 = vadd.f32 0.0, %v1617
      %v1619 = vpop.f32.mrb[0].mxu0
      %1620 = vmatprep.mubr.bf16.mxu0 0
      %1621 = vmatmul.mubr.bf16.gmra.mrb[0].mxu0 %v1560
      %v1622 = vpop.f32.mrb[0].mxu0
      %v1623 = vadd.f32 0.0, %v1622
      %v1624 = vpop.f32.mrb[0].mxu0
      %v1625 = vpop.f32.mrb[0].mxu0
      %v1626 = vadd.f32 0.0, %v1625
      %v1627 = vpop.f32.mrb[0].mxu0
      %1628 = vmatprep.mubr.bf16.mxu0 0
      %1629 = vmatmul.mubr.bf16.gmra.mrb[0].mxu0 %v1563
      %v1630 = vpop.f32.mrb[0].mxu0
      %v1631 = vadd.f32 0.0, %v1630
      %v1632 = vpop.f32.mrb[0].mxu0
      %v1633 = vpop.f32.mrb[0].mxu0
      %v1634 = vadd.f32 0.0, %v1633
      %v1635 = vpop.f32.mrb[0].mxu0
      %1636 = vmatprep.mubr.bf16.mxu0 0
      %1637 = vmatmul.mubr.bf16.gmra.mrb[0].mxu0 %v1566
      %v1638 = vpop.f32.mrb[0].mxu0
      %v1639 = vadd.f32 0.0, %v1638
      %v1640 = vpop.f32.mrb[0].mxu0
      %v1641 = vpop.f32.mrb[0].mxu0
      %v1642 = vadd.f32 0.0, %v1641
      %v1643 = vpop.f32.mrb[0].mxu0
      %1644 = vmatprep.mubr.bf16.mxu0 0
      %1645 = vmatmul.mubr.bf16.gmra.mrb[0].mxu0 %v1569
      %v1646 = vpop.f32.mrb[0].mxu0
      %v1647 = vadd.f32 0.0, %v1646
      %v1648 = vpop.f32.mrb[0].mxu0
      %v1649 = vpop.f32.mrb[0].mxu0
      %v1650 = vadd.f32 0.0, %v1649
      %v1651 = vpop.f32.mrb[0].mxu0
      %1652 = vmatprep.mubr.bf16.mxu0 0
      %1653 = vmatmul.mubr.bf16.gmra.mrb[0].mxu0 %v1572
      %v1654 = vpop.f32.mrb[0].mxu0
      %v1655 = vadd.f32 0.0, %v1654
      %v1656 = vpop.f32.mrb[0].mxu0
      %v1657 = vpop.f32.mrb[0].mxu0
      %v1658 = vadd.f32 0.0, %v1657
      %v1659 = vpop.f32.mrb[0].mxu0
      %1660 = vmatprep.mubr.bf16.mxu0 0
      %1661 = vmatmul.mubr.bf16.gmra.mrb[0].mxu0 %v1575
      %v1662 = vpop.f32.mrb[0].mxu0
      %v1663 = vadd.f32 0.0, %v1662
      %v1664 = vpop.f32.mrb[0].mxu0
      %v1665 = vpop.f32.mrb[0].mxu0
      %v1666 = vadd.f32 0.0, %v1665
      %v1667 = vpop.f32.mrb[0].mxu0
      %1668 = vmatprep.mubr.bf16.mxu0 0
      %1669 = vmatmul.mubr.bf16.gmra.mrb[0].mxu0 %v1578
      %v1670 = vpop.f32.mrb[0].mxu0
      %v1671 = vadd.f32 0.0, %v1670
      %v1672 = vpop.f32.mrb[0].mxu0
      %v1673 = vpop.f32.mrb[0].mxu0
      %v1674 = vadd.f32 0.0, %v1673
      %v1675 = vpop.f32.mrb[0].mxu0
      %1676 = vdwg.mxu0
      %v1677 = vunpack.c.l.bf16 %v1475
      %v1678 = vunpack.c.l.bf16 %v1476
      %v1679 = vunpack.c.l.bf16 %v1477
      %v1680 = vunpack.c.l.bf16 %v1478
      %v1681 = vunpack.c.l.bf16 %v1479
      %v1682 = vunpack.c.l.bf16 %v1480
      %v1683 = vunpack.c.l.bf16 %v1481
      %v1684 = vunpack.c.l.bf16 %v1482
      %v1685 = vunpack.c.l.bf16 %v1483
      %v1686 = vunpack.c.l.bf16 %v1484
      %v1687 = vunpack.c.l.bf16 %v1485
      %v1688 = vunpack.c.l.bf16 %v1486
      %v1689 = vunpack.c.l.bf16 %v1487
      %v1690 = vunpack.c.l.bf16 %v1488
      %v1691 = vunpack.c.l.bf16 %v1489
      %v1692 = vunpack.c.l.bf16 %v1490
      %1693 = vmatprep.subr.mxu0 0.0
      %1694 = vmatpush1.msra.mxu0 %v1615
      %1695 = vmatprep.subr.mxu0 0.0
      %1696 = vmatpush1.msra.mxu0 %v1618
      %1697 = vmatprep.subr.mxu0 0.0
      %1698 = vmatpush1.msra.mxu0 %v1623
      %1699 = vmatprep.subr.mxu0 0.0
      %1700 = vmatpush1.msra.mxu0 %v1626
      %1701 = vmatprep.subr.mxu0 0.0
      %1702 = vmatpush1.msra.mxu0 %v1631
      %1703 = vmatprep.subr.mxu0 0.0
      %1704 = vmatpush1.msra.mxu0 %v1634
      %1705 = vmatprep.subr.mxu0 0.0
      %1706 = vmatpush1.msra.mxu0 %v1639
      %1707 = vmatprep.subr.mxu0 0.0
      %1708 = vmatpush1.msra.mxu0 %v1642
      %1709 = vmatprep.subr.mxu0 0.0
      %1710 = vmatpush1.msra.mxu0 %v1647
      %1711 = vmatprep.subr.mxu0 0.0
      %1712 = vmatpush1.msra.mxu0 %v1650
      %1713 = vmatprep.subr.mxu0 0.0
      %1714 = vmatpush1.msra.mxu0 %v1655
      %1715 = vmatprep.subr.mxu0 0.0
      %1716 = vmatpush1.msra.mxu0 %v1658
      %1717 = vmatprep.subr.mxu0 0.0
      %1718 = vmatpush1.msra.mxu0 %v1663
      %1719 = vmatprep.subr.mxu0 0.0
      %1720 = vmatpush1.msra.mxu0 %v1666
      %1721 = vmatprep.subr.mxu0 0.0
      %1722 = vmatpush1.msra.mxu0 %v1671
      %1723 = vmatprep.subr.mxu0 0.0
      %1724 = vmatpush1.msra.mxu0 %v1674
      %1725 = vmatprep.subr.mxu0 0.0
      %1726 = vmatpush1.msra.mxu0 0.0
      %1727 = vmatprep.subr.mxu0 0.0
      %1728 = vmatpush1.msra.mxu0 0.0
      %1729 = vmatprep.subr.mxu0 0.0
      %1730 = vmatpush1.msra.mxu0 0.0
      %1731 = vmatprep.subr.mxu0 0.0
      %1732 = vmatpush1.msra.mxu0 0.0
      %1733 = vmatprep.subr.mxu0 0.0
      %1734 = vmatpush1.msra.mxu0 0.0
      %1735 = vmatprep.subr.mxu0 0.0
      %1736 = vmatpush1.msra.mxu0 0.0
      %1737 = vmatprep.subr.mxu0 0.0
      %1738 = vmatpush1.msra.mxu0 0.0
      %1739 = vmatprep.subr.mxu0 0.0
      %1740 = vmatpush1.msra.mxu0 0.0
      %1741 = vmatprep.subr.mxu0 0.0
      %1742 = vmatpush1.msra.mxu0 0.0
      %1743 = vmatprep.subr.mxu0 0.0
      %1744 = vmatpush1.msra.mxu0 0.0
      %1745 = vmatprep.subr.mxu0 0.0
      %1746 = vmatpush1.msra.mxu0 0.0
      %1747 = vmatprep.subr.mxu0 0.0
      %1748 = vmatpush1.msra.mxu0 0.0
      %1749 = vmatprep.subr.mxu0 0.0
      %1750 = vmatpush1.msra.mxu0 0.0
      %1751 = vmatprep.subr.mxu0 0.0
      %1752 = vmatpush1.msra.mxu0 0.0
      %1753 = vmatprep.subr.mxu0 0.0
      %1754 = vmatpush1.msra.mxu0 0.0
      %1755 = vmatprep.subr.mxu0 0.0
      %1756 = vmatpush1.msra.mxu0 0.0
      %1757 = vmatprep.mubr.f32.mxu0 0.0
      %1758 = vmatmul.mubr.f32.gmra.mrb[0].mxu0 %v1677
      %v1759 = vpop.f32.mrb[0].mxu0
      %v1760 = vadd.f32 0.0, %v1759
      %v1761 = vpop.f32.mrb[0].mxu0
      %1762 = vmatprep.mubr.f32.mxu0 0.0
      %1763 = vmatmul.mubr.f32.gmra.mrb[0].mxu0 %v1678
      %v1764 = vpop.f32.mrb[0].mxu0
      %v1765 = vadd.f32 0.0, %v1764
      %v1766 = vpop.f32.mrb[0].mxu0
      %1767 = vmatprep.mubr.f32.mxu0 0.0
      %1768 = vmatmul.mubr.f32.gmra.mrb[0].mxu0 %v1679
      %v1769 = vpop.f32.mrb[0].mxu0
      %v1770 = vadd.f32 0.0, %v1769
      %v1771 = vpop.f32.mrb[0].mxu0
      %1772 = vmatprep.mubr.f32.mxu0 0.0
      %1773 = vmatmul.mubr.f32.gmra.mrb[0].mxu0 %v1680
      %v1774 = vpop.f32.mrb[0].mxu0
      %v1775 = vadd.f32 0.0, %v1774
      %v1776 = vpop.f32.mrb[0].mxu0
      %1777 = vmatprep.mubr.f32.mxu0 0.0
      %1778 = vmatmul.mubr.f32.gmra.mrb[0].mxu0 %v1681
      %v1779 = vpop.f32.mrb[0].mxu0
      %v1780 = vadd.f32 0.0, %v1779
      %v1781 = vpop.f32.mrb[0].mxu0
      %1782 = vmatprep.mubr.f32.mxu0 0.0
      %1783 = vmatmul.mubr.f32.gmra.mrb[0].mxu0 %v1682
      %v1784 = vpop.f32.mrb[0].mxu0
      %v1785 = vadd.f32 0.0, %v1784
      %v1786 = vpop.f32.mrb[0].mxu0
      %1787 = vmatprep.mubr.f32.mxu0 0.0
      %1788 = vmatmul.mubr.f32.gmra.mrb[0].mxu0 %v1683
      %v1789 = vpop.f32.mrb[0].mxu0
      %v1790 = vadd.f32 0.0, %v1789
      %v1791 = vpop.f32.mrb[0].mxu0
      %1792 = vmatprep.mubr.f32.mxu0 0.0
      %1793 = vmatmul.mubr.f32.gmra.mrb[0].mxu0 %v1684
      %v1794 = vpop.f32.mrb[0].mxu0
      %v1795 = vadd.f32 0.0, %v1794
      %v1796 = vpop.f32.mrb[0].mxu0
      %1797 = vmatprep.mubr.f32.mxu0 0.0
      %1798 = vmatmul.mubr.f32.gmra.mrb[0].mxu0 %v1685
      %v1799 = vpop.f32.mrb[0].mxu0
      %v1800 = vadd.f32 0.0, %v1799
      %v1801 = vpop.f32.mrb[0].mxu0
      %1802 = vmatprep.mubr.f32.mxu0 0.0
      %1803 = vmatmul.mubr.f32.gmra.mrb[0].mxu0 %v1686
      %v1804 = vpop.f32.mrb[0].mxu0
      %v1805 = vadd.f32 0.0, %v1804
      %v1806 = vpop.f32.mrb[0].mxu0
      %1807 = vmatprep.mubr.f32.mxu0 0.0
      %1808 = vmatmul.mubr.f32.gmra.mrb[0].mxu0 %v1687
      %v1809 = vpop.f32.mrb[0].mxu0
      %v1810 = vadd.f32 0.0, %v1809
      %v1811 = vpop.f32.mrb[0].mxu0
      %1812 = vmatprep.mubr.f32.mxu0 0.0
      %1813 = vmatmul.mubr.f32.gmra.mrb[0].mxu0 %v1688
      %v1814 = vpop.f32.mrb[0].mxu0
      %v1815 = vadd.f32 0.0, %v1814
      %v1816 = vpop.f32.mrb[0].mxu0
      %1817 = vmatprep.mubr.f32.mxu0 0.0
      %1818 = vmatmul.mubr.f32.gmra.mrb[0].mxu0 %v1689
      %v1819 = vpop.f32.mrb[0].mxu0
      %v1820 = vadd.f32 0.0, %v1819
      %v1821 = vpop.f32.mrb[0].mxu0
      %1822 = vmatprep.mubr.f32.mxu0 0.0
      %1823 = vmatmul.mubr.f32.gmra.mrb[0].mxu0 %v1690
      %v1824 = vpop.f32.mrb[0].mxu0
      %v1825 = vadd.f32 0.0, %v1824
      %v1826 = vpop.f32.mrb[0].mxu0
      %1827 = vmatprep.mubr.f32.mxu0 0.0
      %1828 = vmatmul.mubr.f32.gmra.mrb[0].mxu0 %v1691
      %v1829 = vpop.f32.mrb[0].mxu0
      %v1830 = vadd.f32 0.0, %v1829
      %v1831 = vpop.f32.mrb[0].mxu0
      %1832 = vmatprep.mubr.f32.mxu0 0.0
      %1833 = vmatmul.mubr.f32.gmra.mrb[0].mxu0 %v1692
      %v1834 = vpop.f32.mrb[0].mxu0
      %v1835 = vadd.f32 0.0, %v1834
      %v1836 = vpop.f32.mrb[0].mxu0
      %1837 = vdwg.mxu0
      %v1838 = vmax.f32 %v1760, 0.0
      %v1839 = vmax.f32 %v1765, 0.0
      %v1840 = vmax.f32 %v1770, 0.0
      %v1841 = vmax.f32 %v1775, 0.0
      %v1842 = vmax.f32 %v1780, 0.0
      %v1843 = vmax.f32 %v1785, 0.0
      %v1844 = vmax.f32 %v1790, 0.0
      %v1845 = vmax.f32 %v1795, 0.0
      %v1846 = vmax.f32 %v1800, 0.0
      %v1847 = vmax.f32 %v1805, 0.0
      %v1848 = vmax.f32 %v1810, 0.0
      %v1849 = vmax.f32 %v1815, 0.0
      %v1850 = vmax.f32 %v1820, 0.0
      %v1851 = vmax.f32 %v1825, 0.0
      %v1852 = vmax.f32 %v1830, 0.0
      %v1853 = vmax.f32 %v1835, 0.0
      %v1854 = vld [vmem:[%s4] sm:$0xf]
      %v1855 = vld [vmem:[%s4 + $0x4] sm:$0xf]
      %v1856 = vld [vmem:[%s4 + $0x8] sm:$0xf]
      %v1857 = vld [vmem:[%s4 + $0xc] sm:$0xf]
      %v1858 = vunpack.c.l.bf16 %v1854
      %v1859 = vunpack.c.l.bf16 %v1855
      %v1860 = vunpack.c.l.bf16 %v1856
      %v1861 = vunpack.c.l.bf16 %v1857
      %v1862 = vld [vmem:[%s5] sm:$0x1]
      %v1864 = vlaneseq
      %v1865 = vshrl.u32 %v1864, 7
      %v1866 = vsub.s32 0, %v1865
      %v1867 = vrot.slane %v1862, %v1866
      %v1870 = vsel %vm710, %v1838, 0
      %v1873 = vsel %vm710, %v1839, 0
      %v1876 = vsel %vm710, %v1840, 0
      %v1879 = vsel %vm710, %v1841, 0
      %v1882 = vsel %vm710, %v1842, 0
      %v1885 = vsel %vm710, %v1843, 0
      %v1888 = vsel %vm710, %v1844, 0
      %v1891 = vsel %vm710, %v1845, 0
      %v1894 = vsel %vm710, %v1846, 0
      %v1897 = vsel %vm710, %v1847, 0
      %v1900 = vsel %vm710, %v1848, 0
      %v1903 = vsel %vm710, %v1849, 0
      %v1906 = vsel %vm710, %v1850, 0
      %v1909 = vsel %vm710, %v1851, 0
      %v1912 = vsel %vm710, %v1852, 0
      %v1915 = vsel %vm710, %v1853, 0
      %1917 = vmatprep.subr.mxu0 0.0
      %1918 = vmatpush1.msra.mxu0 %v1858
      %1919 = vmatprep.subr.mxu0 0.0
      %1920 = vmatpush1.msra.mxu0 %v1859
      %1921 = vmatprep.subr.mxu0 0.0
      %1922 = vmatpush1.msra.mxu0 %v1860
      %1923 = vmatprep.subr.mxu0 0.0
      %1924 = vmatpush1.msra.mxu0 %v1861
      %1925 = vmatprep.subr.mxu0 0.0
      %1926 = vmatpush1.msra.mxu0 0.0
      %1927 = vmatprep.subr.mxu0 0.0
      %1928 = vmatpush1.msra.mxu0 0.0
      %1929 = vmatprep.subr.mxu0 0.0
      %1930 = vmatpush1.msra.mxu0 0.0
      %1931 = vmatprep.subr.mxu0 0.0
      %1932 = vmatpush1.msra.mxu0 0.0
      %1933 = vmatprep.subr.mxu0 0.0
      %1934 = vmatpush1.msra.mxu0 0.0
      %1935 = vmatprep.subr.mxu0 0.0
      %1936 = vmatpush1.msra.mxu0 0.0
      %1937 = vmatprep.subr.mxu0 0.0
      %1938 = vmatpush1.msra.mxu0 0.0
      %1939 = vmatprep.subr.mxu0 0.0
      %1940 = vmatpush1.msra.mxu0 0.0
      %1941 = vmatprep.subr.mxu0 0.0
      %1942 = vmatpush1.msra.mxu0 0.0
      %1943 = vmatprep.subr.mxu0 0.0
      %1944 = vmatpush1.msra.mxu0 0.0
      %1945 = vmatprep.subr.mxu0 0.0
      %1946 = vmatpush1.msra.mxu0 0.0
      %1947 = vmatprep.subr.mxu0 0.0
      %1948 = vmatpush1.msra.mxu0 0.0
      %1949 = vmatprep.subr.mxu0 0.0
      %1950 = vmatpush1.msra.mxu0 0.0
      %1951 = vmatprep.subr.mxu0 0.0
      %1952 = vmatpush1.msra.mxu0 0.0
      %1953 = vmatprep.subr.mxu0 0.0
      %1954 = vmatpush1.msra.mxu0 0.0
      %1955 = vmatprep.subr.mxu0 0.0
      %1956 = vmatpush1.msra.mxu0 0.0
      %1957 = vmatprep.subr.mxu0 0.0
      %1958 = vmatpush1.msra.mxu0 0.0
      %1959 = vmatprep.subr.mxu0 0.0
      %1960 = vmatpush1.msra.mxu0 0.0
      %1961 = vmatprep.subr.mxu0 0.0
      %1962 = vmatpush1.msra.mxu0 0.0
      %1963 = vmatprep.subr.mxu0 0.0
      %1964 = vmatpush1.msra.mxu0 0.0
      %1965 = vmatprep.subr.mxu0 0.0
      %1966 = vmatpush1.msra.mxu0 0.0
      %1967 = vmatprep.subr.mxu0 0.0
      %1968 = vmatpush1.msra.mxu0 0.0
      %1969 = vmatprep.subr.mxu0 0.0
      %1970 = vmatpush1.msra.mxu0 0.0
      %1971 = vmatprep.subr.mxu0 0.0
      %1972 = vmatpush1.msra.mxu0 0.0
      %1973 = vmatprep.subr.mxu0 0.0
      %1974 = vmatpush1.msra.mxu0 0.0
      %1975 = vmatprep.subr.mxu0 0.0
      %1976 = vmatpush1.msra.mxu0 0.0
      %1977 = vmatprep.subr.mxu0 0.0
      %1978 = vmatpush1.msra.mxu0 0.0
      %1979 = vmatprep.subr.mxu0 0.0
      %1980 = vmatpush1.msra.mxu0 0.0
      %1981 = vmatprep.mubr.f32.mxu0 0.0
      %1982 = vmatmul.mubr.f32.gmra.mrb[0].mxu0 %v1870
      %v1983 = vpop.f32.mrb[0].mxu0
      %v1984 = vadd.f32 %v1867, %v1983
      %v1985 = vpop.f32.mrb[0].mxu0
      %1986 = vmatprep.mubr.f32.mxu0 0.0
      %1987 = vmatmul.mubr.f32.gmra.mrb[0].mxu0 %v1873
      %v1988 = vpop.f32.mrb[0].mxu0
      %v1989 = vadd.f32 %v1867, %v1988
      %v1990 = vpop.f32.mrb[0].mxu0
      %1991 = vmatprep.mubr.f32.mxu0 0.0
      %1992 = vmatmul.mubr.f32.gmra.mrb[0].mxu0 %v1876
      %v1993 = vpop.f32.mrb[0].mxu0
      %v1994 = vadd.f32 %v1867, %v1993
      %v1995 = vpop.f32.mrb[0].mxu0
      %1996 = vmatprep.mubr.f32.mxu0 0.0
      %1997 = vmatmul.mubr.f32.gmra.mrb[0].mxu0 %v1879
      %v1998 = vpop.f32.mrb[0].mxu0
      %v1999 = vadd.f32 %v1867, %v1998
      %v2000 = vpop.f32.mrb[0].mxu0
      %2001 = vmatprep.mubr.f32.mxu0 0.0
      %2002 = vmatmul.mubr.f32.gmra.mrb[0].mxu0 %v1882
      %v2003 = vpop.f32.mrb[0].mxu0
      %v2004 = vadd.f32 %v1867, %v2003
      %v2005 = vpop.f32.mrb[0].mxu0
      %2006 = vmatprep.mubr.f32.mxu0 0.0
      %2007 = vmatmul.mubr.f32.gmra.mrb[0].mxu0 %v1885
      %v2008 = vpop.f32.mrb[0].mxu0
      %v2009 = vadd.f32 %v1867, %v2008
      %v2010 = vpop.f32.mrb[0].mxu0
      %2011 = vmatprep.mubr.f32.mxu0 0.0
      %2012 = vmatmul.mubr.f32.gmra.mrb[0].mxu0 %v1888
      %v2013 = vpop.f32.mrb[0].mxu0
      %v2014 = vadd.f32 %v1867, %v2013
      %v2015 = vpop.f32.mrb[0].mxu0
      %2016 = vmatprep.mubr.f32.mxu0 0.0
      %2017 = vmatmul.mubr.f32.gmra.mrb[0].mxu0 %v1891
      %v2018 = vpop.f32.mrb[0].mxu0
      %v2019 = vadd.f32 %v1867, %v2018
      %v2020 = vpop.f32.mrb[0].mxu0
      %2021 = vmatprep.mubr.f32.mxu0 0.0
      %2022 = vmatmul.mubr.f32.gmra.mrb[0].mxu0 %v1894
      %v2023 = vpop.f32.mrb[0].mxu0
      %v2024 = vadd.f32 %v1867, %v2023
      %v2025 = vpop.f32.mrb[0].mxu0
      %2026 = vmatprep.mubr.f32.mxu0 0.0
      %2027 = vmatmul.mubr.f32.gmra.mrb[0].mxu0 %v1897
      %v2028 = vpop.f32.mrb[0].mxu0
      %v2029 = vadd.f32 %v1867, %v2028
      %v2030 = vpop.f32.mrb[0].mxu0
      %2031 = vmatprep.mubr.f32.mxu0 0.0
      %2032 = vmatmul.mubr.f32.gmra.mrb[0].mxu0 %v1900
      %v2033 = vpop.f32.mrb[0].mxu0
      %v2034 = vadd.f32 %v1867, %v2033
      %v2035 = vpop.f32.mrb[0].mxu0
      %2036 = vmatprep.mubr.f32.mxu0 0.0
      %2037 = vmatmul.mubr.f32.gmra.mrb[0].mxu0 %v1903
      %v2038 = vpop.f32.mrb[0].mxu0
      %v2039 = vadd.f32 %v1867, %v2038
      %v2040 = vpop.f32.mrb[0].mxu0
      %2041 = vmatprep.mubr.f32.mxu0 0.0
      %2042 = vmatmul.mubr.f32.gmra.mrb[0].mxu0 %v1906
      %v2043 = vpop.f32.mrb[0].mxu0
      %v2044 = vadd.f32 %v1867, %v2043
      %v2045 = vpop.f32.mrb[0].mxu0
      %2046 = vmatprep.mubr.f32.mxu0 0.0
      %2047 = vmatmul.mubr.f32.gmra.mrb[0].mxu0 %v1909
      %v2048 = vpop.f32.mrb[0].mxu0
      %v2049 = vadd.f32 %v1867, %v2048
      %v2050 = vpop.f32.mrb[0].mxu0
      %2051 = vmatprep.mubr.f32.mxu0 0.0
      %2052 = vmatmul.mubr.f32.gmra.mrb[0].mxu0 %v1912
      %v2053 = vpop.f32.mrb[0].mxu0
      %v2054 = vadd.f32 %v1867, %v2053
      %v2055 = vpop.f32.mrb[0].mxu0
      %2056 = vmatprep.mubr.f32.mxu0 0.0
      %2057 = vmatmul.mubr.f32.gmra.mrb[0].mxu0 %v1915
      %v2058 = vpop.f32.mrb[0].mxu0
      %v2059 = vadd.f32 %v1867, %v2058
      %v2060 = vpop.f32.mrb[0].mxu0
      %2061 = vdwg.mxu0
      %v2062 = vmax.f32 %v1984, 0.0
      %v2063 = vmax.f32 %v1989, 0.0
      %v2064 = vmax.f32 %v1994, 0.0
      %v2065 = vmax.f32 %v1999, 0.0
      %v2066 = vmax.f32 %v2004, 0.0
      %v2067 = vmax.f32 %v2009, 0.0
      %v2068 = vmax.f32 %v2014, 0.0
      %v2069 = vmax.f32 %v2019, 0.0
      %v2070 = vmax.f32 %v2024, 0.0
      %v2071 = vmax.f32 %v2029, 0.0
      %v2072 = vmax.f32 %v2034, 0.0
      %v2073 = vmax.f32 %v2039, 0.0
      %v2074 = vmax.f32 %v2044, 0.0
      %v2075 = vmax.f32 %v2049, 0.0
      %v2076 = vmax.f32 %v2054, 0.0
      %v2077 = vmax.f32 %v2059, 0.0
      %v2078 = vsub.f32 0.0, %v1984
      %v2079 = vsub.f32 0.0, %v1989
      %v2080 = vsub.f32 0.0, %v1994
      %v2081 = vsub.f32 0.0, %v1999
      %v2082 = vsub.f32 0.0, %v2004
      %v2083 = vsub.f32 0.0, %v2009
      %v2084 = vsub.f32 0.0, %v2014
      %v2085 = vsub.f32 0.0, %v2019
      %v2086 = vsub.f32 0.0, %v2024
      %v2087 = vsub.f32 0.0, %v2029
      %v2088 = vsub.f32 0.0, %v2034
      %v2089 = vsub.f32 0.0, %v2039
      %v2090 = vsub.f32 0.0, %v2044
      %v2091 = vsub.f32 0.0, %v2049
      %v2092 = vsub.f32 0.0, %v2054
      %v2093 = vsub.f32 0.0, %v2059
      %v2094 = vmul.f32 %v2078, 1.442695
      %v2095 = vpow.pop %v2094
      %v2096 = vmul.f32 %v2079, 1.442695
      %v2097 = vpow.pop %v2096
      %v2098 = vmul.f32 %v2080, 1.442695
      %v2099 = vpow.pop %v2098
      %v2100 = vmul.f32 %v2081, 1.442695
      %v2101 = vpow.pop %v2100
      %v2102 = vmul.f32 %v2082, 1.442695
      %v2103 = vpow.pop %v2102
      %v2104 = vmul.f32 %v2083, 1.442695
      %v2105 = vpow.pop %v2104
      %v2106 = vmul.f32 %v2084, 1.442695
      %v2107 = vpow.pop %v2106
      %v2108 = vmul.f32 %v2085, 1.442695
      %v2109 = vpow.pop %v2108
      %v2110 = vmul.f32 %v2086, 1.442695
      %v2111 = vpow.pop %v2110
      %v2112 = vmul.f32 %v2087, 1.442695
      %v2113 = vpow.pop %v2112
      %v2114 = vmul.f32 %v2088, 1.442695
      %v2115 = vpow.pop %v2114
      %v2116 = vmul.f32 %v2089, 1.442695
      %v2117 = vpow.pop %v2116
      %v2118 = vmul.f32 %v2090, 1.442695
      %v2119 = vpow.pop %v2118
      %v2120 = vmul.f32 %v2091, 1.442695
      %v2121 = vpow.pop %v2120
      %v2122 = vmul.f32 %v2092, 1.442695
      %v2123 = vpow.pop %v2122
      %v2124 = vmul.f32 %v2093, 1.442695
      %v2125 = vpow.pop %v2124
      %v2126 = vadd.f32 %v2095, 1.0
      %v2127 = vadd.f32 %v2097, 1.0
      %v2128 = vadd.f32 %v2099, 1.0
      %v2129 = vadd.f32 %v2101, 1.0
      %v2130 = vadd.f32 %v2103, 1.0
      %v2131 = vadd.f32 %v2105, 1.0
      %v2132 = vadd.f32 %v2107, 1.0
      %v2133 = vadd.f32 %v2109, 1.0
      %v2134 = vadd.f32 %v2111, 1.0
      %v2135 = vadd.f32 %v2113, 1.0
      %v2136 = vadd.f32 %v2115, 1.0
      %v2137 = vadd.f32 %v2117, 1.0
      %v2138 = vadd.f32 %v2119, 1.0
      %v2139 = vadd.f32 %v2121, 1.0
      %v2140 = vadd.f32 %v2123, 1.0
      %v2141 = vadd.f32 %v2125, 1.0
      %v2142 = vrcp.pop %v2126
      %v2143 = vrcp.pop %v2127
      %v2144 = vrcp.pop %v2128
      %v2145 = vrcp.pop %v2129
      %v2146 = vrcp.pop %v2130
      %v2147 = vrcp.pop %v2131
      %v2148 = vrcp.pop %v2132
      %v2149 = vrcp.pop %v2133
      %v2150 = vrcp.pop %v2134
      %v2151 = vrcp.pop %v2135
      %v2152 = vrcp.pop %v2136
      %v2153 = vrcp.pop %v2137
      %v2154 = vrcp.pop %v2138
      %v2155 = vrcp.pop %v2139
      %v2156 = vrcp.pop %v2140
      %v2157 = vrcp.pop %v2141
      %2174 = vrot.lane.b32.xlu0 %v1492, 32
      %v2175 = vpop.permute.xlu0 %2174
      %2176 = vrot.lane.b32.xlu0 %v1493, 32
      %v2177 = vpop.permute.xlu0 %2176
      %2178 = vrot.lane.b32.xlu0 %v1494, 32
      %v2179 = vpop.permute.xlu0 %2178
      %2180 = vrot.lane.b32.xlu0 %v1495, 32
      %v2181 = vpop.permute.xlu0 %2180
      %2182 = vrot.lane.b32.xlu0 %v1496, 32
      %v2183 = vpop.permute.xlu0 %2182
      %2184 = vrot.lane.b32.xlu0 %v1497, 32
      %v2185 = vpop.permute.xlu0 %2184
      %2186 = vrot.lane.b32.xlu0 %v1498, 32
      %v2187 = vpop.permute.xlu0 %2186
      %2188 = vrot.lane.b32.xlu0 %v1499, 32
      %v2189 = vpop.permute.xlu0 %2188
      %2190 = vrot.lane.b32.xlu0 %v1500, 32
      %v2191 = vpop.permute.xlu0 %2190
      %2192 = vrot.lane.b32.xlu0 %v1501, 32
      %v2193 = vpop.permute.xlu0 %2192
      %2194 = vrot.lane.b32.xlu0 %v1502, 32
      %v2195 = vpop.permute.xlu0 %2194
      %2196 = vrot.lane.b32.xlu0 %v1503, 32
      %v2197 = vpop.permute.xlu0 %2196
      %2198 = vrot.lane.b32.xlu0 %v1504, 32
      %v2199 = vpop.permute.xlu0 %2198
      %2200 = vrot.lane.b32.xlu0 %v1505, 32
      %v2201 = vpop.permute.xlu0 %2200
      %2202 = vrot.lane.b32.xlu0 %v1506, 32
      %v2203 = vpop.permute.xlu0 %2202
      %2204 = vrot.lane.b32.xlu0 %v1507, 32
      %v2205 = vpop.permute.xlu0 %2204
      %v2222 = vmul.f32 %v2142, %v2175
      %v2223 = vmul.f32 %v2143, %v2177
      %v2224 = vmul.f32 %v2144, %v2179
      %v2225 = vmul.f32 %v2145, %v2181
      %v2226 = vmul.f32 %v2146, %v2183
      %v2227 = vmul.f32 %v2147, %v2185
      %v2228 = vmul.f32 %v2148, %v2187
      %v2229 = vmul.f32 %v2149, %v2189
      %v2230 = vmul.f32 %v2150, %v2191
      %v2231 = vmul.f32 %v2151, %v2193
      %v2232 = vmul.f32 %v2152, %v2195
      %v2233 = vmul.f32 %v2153, %v2197
      %v2234 = vmul.f32 %v2154, %v2199
      %v2235 = vmul.f32 %v2155, %v2201
      %v2236 = vmul.f32 %v2156, %v2203
      %v2237 = vmul.f32 %v2157, %v2205
      %2239 = vset.pattern.permute.xlu0 32
      %2240 = vperm.xlu0 %2239, %v2222
      %v2241 = vpop.permute.xlu0 %2240
      %2244 = vset.pattern.permute.xlu0 32
      %2245 = vperm.xlu0 %2244, %v2223
      %v2246 = vpop.permute.xlu0 %2245
      %2249 = vset.pattern.permute.xlu0 32
      %2250 = vperm.xlu0 %2249, %v2224
      %v2251 = vpop.permute.xlu0 %2250
      %2254 = vset.pattern.permute.xlu0 32
      %2255 = vperm.xlu0 %2254, %v2225
      %v2256 = vpop.permute.xlu0 %2255
      %2259 = vset.pattern.permute.xlu0 32
      %2260 = vperm.xlu0 %2259, %v2226
      %v2261 = vpop.permute.xlu0 %2260
      %2264 = vset.pattern.permute.xlu0 32
      %2265 = vperm.xlu0 %2264, %v2227
      %v2266 = vpop.permute.xlu0 %2265
      %2269 = vset.pattern.permute.xlu0 32
      %2270 = vperm.xlu0 %2269, %v2228
      %v2271 = vpop.permute.xlu0 %2270
      %2274 = vset.pattern.permute.xlu0 32
      %2275 = vperm.xlu0 %2274, %v2229
      %v2276 = vpop.permute.xlu0 %2275
      %2279 = vset.pattern.permute.xlu0 32
      %2280 = vperm.xlu0 %2279, %v2230
      %v2281 = vpop.permute.xlu0 %2280
      %2284 = vset.pattern.permute.xlu0 32
      %2285 = vperm.xlu0 %2284, %v2231
      %v2286 = vpop.permute.xlu0 %2285
      %2289 = vset.pattern.permute.xlu0 32
      %2290 = vperm.xlu0 %2289, %v2232
      %v2291 = vpop.permute.xlu0 %2290
      %2294 = vset.pattern.permute.xlu0 32
      %2295 = vperm.xlu0 %2294, %v2233
      %v2296 = vpop.permute.xlu0 %2295
      %2299 = vset.pattern.permute.xlu0 32
      %2300 = vperm.xlu0 %2299, %v2234
      %v2301 = vpop.permute.xlu0 %2300
      %2304 = vset.pattern.permute.xlu0 32
      %2305 = vperm.xlu0 %2304, %v2235
      %v2306 = vpop.permute.xlu0 %2305
      %2309 = vset.pattern.permute.xlu0 32
      %2310 = vperm.xlu0 %2309, %v2236
      %v2311 = vpop.permute.xlu0 %2310
      %2314 = vset.pattern.permute.xlu0 32
      %2315 = vperm.xlu0 %2314, %v2237
      %v2316 = vpop.permute.xlu0 %2315
      %v2318 = vmul.f32 %v2241, %v2062
      %v2319 = vmul.f32 %v2246, %v2063
      %v2320 = vmul.f32 %v2251, %v2064
      %v2321 = vmul.f32 %v2256, %v2065
      %v2322 = vmul.f32 %v2261, %v2066
      %v2323 = vmul.f32 %v2266, %v2067
      %v2324 = vmul.f32 %v2271, %v2068
      %v2325 = vmul.f32 %v2276, %v2069
      %v2326 = vmul.f32 %v2281, %v2070
      %v2327 = vmul.f32 %v2286, %v2071
      %v2328 = vmul.f32 %v2291, %v2072
      %v2329 = vmul.f32 %v2296, %v2073
      %v2330 = vmul.f32 %v2301, %v2074
      %v2331 = vmul.f32 %v2306, %v2075
      %v2332 = vmul.f32 %v2311, %v2076
      %v2333 = vmul.f32 %v2316, %v2077
      %v2334 = vsel %vm710, %v2318, 0.0
      %v2335 = vrot.slane %v2334, 4
      %v2336 = vadd.f32 %v2334, %v2335
      %v2337 = vrot.slane %v2336, 2
      %v2338 = vadd.f32 %v2336, %v2337
      %v2339 = vrot.slane %v2338, 1
      %v2340 = vadd.f32 %v2338, %v2339
      %v2341 = vsel %vm710, %v2319, 0.0
      %v2342 = vrot.slane %v2341, 4
      %v2343 = vadd.f32 %v2341, %v2342
      %v2344 = vrot.slane %v2343, 2
      %v2345 = vadd.f32 %v2343, %v2344
      %v2346 = vrot.slane %v2345, 1
      %v2347 = vadd.f32 %v2345, %v2346
      %v2348 = vsel %vm710, %v2320, 0.0
      %v2349 = vrot.slane %v2348, 4
      %v2350 = vadd.f32 %v2348, %v2349
      %v2351 = vrot.slane %v2350, 2
      %v2352 = vadd.f32 %v2350, %v2351
      %v2353 = vrot.slane %v2352, 1
      %v2354 = vadd.f32 %v2352, %v2353
      %v2355 = vsel %vm710, %v2321, 0.0
      %v2356 = vrot.slane %v2355, 4
      %v2357 = vadd.f32 %v2355, %v2356
      %v2358 = vrot.slane %v2357, 2
      %v2359 = vadd.f32 %v2357, %v2358
      %v2360 = vrot.slane %v2359, 1
      %v2361 = vadd.f32 %v2359, %v2360
      %v2362 = vsel %vm710, %v2322, 0.0
      %v2363 = vrot.slane %v2362, 4
      %v2364 = vadd.f32 %v2362, %v2363
      %v2365 = vrot.slane %v2364, 2
      %v2366 = vadd.f32 %v2364, %v2365
      %v2367 = vrot.slane %v2366, 1
      %v2368 = vadd.f32 %v2366, %v2367
      %v2369 = vsel %vm710, %v2323, 0.0
      %v2370 = vrot.slane %v2369, 4
      %v2371 = vadd.f32 %v2369, %v2370
      %v2372 = vrot.slane %v2371, 2
      %v2373 = vadd.f32 %v2371, %v2372
      %v2374 = vrot.slane %v2373, 1
      %v2375 = vadd.f32 %v2373, %v2374
      %v2376 = vsel %vm710, %v2324, 0.0
      %v2377 = vrot.slane %v2376, 4
      %v2378 = vadd.f32 %v2376, %v2377
      %v2379 = vrot.slane %v2378, 2
      %v2380 = vadd.f32 %v2378, %v2379
      %v2381 = vrot.slane %v2380, 1
      %v2382 = vadd.f32 %v2380, %v2381
      %v2383 = vsel %vm710, %v2325, 0.0
      %v2384 = vrot.slane %v2383, 4
      %v2385 = vadd.f32 %v2383, %v2384
      %v2386 = vrot.slane %v2385, 2
      %v2387 = vadd.f32 %v2385, %v2386
      %v2388 = vrot.slane %v2387, 1
      %v2389 = vadd.f32 %v2387, %v2388
      %v2390 = vsel %vm710, %v2326, 0.0
      %v2391 = vrot.slane %v2390, 4
      %v2392 = vadd.f32 %v2390, %v2391
      %v2393 = vrot.slane %v2392, 2
      %v2394 = vadd.f32 %v2392, %v2393
      %v2395 = vrot.slane %v2394, 1
      %v2396 = vadd.f32 %v2394, %v2395
      %v2397 = vsel %vm710, %v2327, 0.0
      %v2398 = vrot.slane %v2397, 4
      %v2399 = vadd.f32 %v2397, %v2398
      %v2400 = vrot.slane %v2399, 2
      %v2401 = vadd.f32 %v2399, %v2400
      %v2402 = vrot.slane %v2401, 1
      %v2403 = vadd.f32 %v2401, %v2402
      %v2404 = vsel %vm710, %v2328, 0.0
      %v2405 = vrot.slane %v2404, 4
      %v2406 = vadd.f32 %v2404, %v2405
      %v2407 = vrot.slane %v2406, 2
      %v2408 = vadd.f32 %v2406, %v2407
      %v2409 = vrot.slane %v2408, 1
      %v2410 = vadd.f32 %v2408, %v2409
      %v2411 = vsel %vm710, %v2329, 0.0
      %v2412 = vrot.slane %v2411, 4
      %v2413 = vadd.f32 %v2411, %v2412
      %v2414 = vrot.slane %v2413, 2
      %v2415 = vadd.f32 %v2413, %v2414
      %v2416 = vrot.slane %v2415, 1
      %v2417 = vadd.f32 %v2415, %v2416
      %v2418 = vsel %vm710, %v2330, 0.0
      %v2419 = vrot.slane %v2418, 4
      %v2420 = vadd.f32 %v2418, %v2419
      %v2421 = vrot.slane %v2420, 2
      %v2422 = vadd.f32 %v2420, %v2421
      %v2423 = vrot.slane %v2422, 1
      %v2424 = vadd.f32 %v2422, %v2423
      %v2425 = vsel %vm710, %v2331, 0.0
      %v2426 = vrot.slane %v2425, 4
      %v2427 = vadd.f32 %v2425, %v2426
      %v2428 = vrot.slane %v2427, 2
      %v2429 = vadd.f32 %v2427, %v2428
      %v2430 = vrot.slane %v2429, 1
      %v2431 = vadd.f32 %v2429, %v2430
      %v2432 = vsel %vm710, %v2332, 0.0
      %v2433 = vrot.slane %v2432, 4
      %v2434 = vadd.f32 %v2432, %v2433
      %v2435 = vrot.slane %v2434, 2
      %v2436 = vadd.f32 %v2434, %v2435
      %v2437 = vrot.slane %v2436, 1
      %v2438 = vadd.f32 %v2436, %v2437
      %v2439 = vsel %vm710, %v2333, 0.0
      %v2440 = vrot.slane %v2439, 4
      %v2441 = vadd.f32 %v2439, %v2440
      %v2442 = vrot.slane %v2441, 2
      %v2443 = vadd.f32 %v2441, %v2442
      %v2444 = vrot.slane %v2443, 1
      %v2445 = vadd.f32 %v2443, %v2444
      %v2446 = vsel %vm710, %v2318, -inf
      %v2447 = vrot.slane %v2446, 4
      %v2448 = vmax.f32 %v2446, %v2447
      %v2449 = vrot.slane %v2448, 2
      %v2450 = vmax.f32 %v2448, %v2449
      %v2451 = vrot.slane %v2450, 1
      %v2452 = vmax.f32 %v2450, %v2451
      %v2453 = vsel %vm710, %v2319, -inf
      %v2454 = vrot.slane %v2453, 4
      %v2455 = vmax.f32 %v2453, %v2454
      %v2456 = vrot.slane %v2455, 2
      %v2457 = vmax.f32 %v2455, %v2456
      %v2458 = vrot.slane %v2457, 1
      %v2459 = vmax.f32 %v2457, %v2458
      %v2460 = vsel %vm710, %v2320, -inf
      %v2461 = vrot.slane %v2460, 4
      %v2462 = vmax.f32 %v2460, %v2461
      %v2463 = vrot.slane %v2462, 2
      %v2464 = vmax.f32 %v2462, %v2463
      %v2465 = vrot.slane %v2464, 1
      %v2466 = vmax.f32 %v2464, %v2465
      %v2467 = vsel %vm710, %v2321, -inf
      %v2468 = vrot.slane %v2467, 4
      %v2469 = vmax.f32 %v2467, %v2468
      %v2470 = vrot.slane %v2469, 2
      %v2471 = vmax.f32 %v2469, %v2470
      %v2472 = vrot.slane %v2471, 1
      %v2473 = vmax.f32 %v2471, %v2472
      %v2474 = vsel %vm710, %v2322, -inf
      %v2475 = vrot.slane %v2474, 4
      %v2476 = vmax.f32 %v2474, %v2475
      %v2477 = vrot.slane %v2476, 2
      %v2478 = vmax.f32 %v2476, %v2477
      %v2479 = vrot.slane %v2478, 1
      %v2480 = vmax.f32 %v2478, %v2479
      %v2481 = vsel %vm710, %v2323, -inf
      %v2482 = vrot.slane %v2481, 4
      %v2483 = vmax.f32 %v2481, %v2482
      %v2484 = vrot.slane %v2483, 2
      %v2485 = vmax.f32 %v2483, %v2484
      %v2486 = vrot.slane %v2485, 1
      %v2487 = vmax.f32 %v2485, %v2486
      %v2488 = vsel %vm710, %v2324, -inf
      %v2489 = vrot.slane %v2488, 4
      %v2490 = vmax.f32 %v2488, %v2489
      %v2491 = vrot.slane %v2490, 2
      %v2492 = vmax.f32 %v2490, %v2491
      %v2493 = vrot.slane %v2492, 1
      %v2494 = vmax.f32 %v2492, %v2493
      %v2495 = vsel %vm710, %v2325, -inf
      %v2496 = vrot.slane %v2495, 4
      %v2497 = vmax.f32 %v2495, %v2496
      %v2498 = vrot.slane %v2497, 2
      %v2499 = vmax.f32 %v2497, %v2498
      %v2500 = vrot.slane %v2499, 1
      %v2501 = vmax.f32 %v2499, %v2500
      %v2502 = vsel %vm710, %v2326, -inf
      %v2503 = vrot.slane %v2502, 4
      %v2504 = vmax.f32 %v2502, %v2503
      %v2505 = vrot.slane %v2504, 2
      %v2506 = vmax.f32 %v2504, %v2505
      %v2507 = vrot.slane %v2506, 1
      %v2508 = vmax.f32 %v2506, %v2507
      %v2509 = vsel %vm710, %v2327, -inf
      %v2510 = vrot.slane %v2509, 4
      %v2511 = vmax.f32 %v2509, %v2510
      %v2512 = vrot.slane %v2511, 2
      %v2513 = vmax.f32 %v2511, %v2512
      %v2514 = vrot.slane %v2513, 1
      %v2515 = vmax.f32 %v2513, %v2514
      %v2516 = vsel %vm710, %v2328, -inf
      %v2517 = vrot.slane %v2516, 4
      %v2518 = vmax.f32 %v2516, %v2517
      %v2519 = vrot.slane %v2518, 2
      %v2520 = vmax.f32 %v2518, %v2519
      %v2521 = vrot.slane %v2520, 1
      %v2522 = vmax.f32 %v2520, %v2521
      %v2523 = vsel %vm710, %v2329, -inf
      %v2524 = vrot.slane %v2523, 4
      %v2525 = vmax.f32 %v2523, %v2524
      %v2526 = vrot.slane %v2525, 2
      %v2527 = vmax.f32 %v2525, %v2526
      %v2528 = vrot.slane %v2527, 1
      %v2529 = vmax.f32 %v2527, %v2528
      %v2530 = vsel %vm710, %v2330, -inf
      %v2531 = vrot.slane %v2530, 4
      %v2532 = vmax.f32 %v2530, %v2531
      %v2533 = vrot.slane %v2532, 2
      %v2534 = vmax.f32 %v2532, %v2533
      %v2535 = vrot.slane %v2534, 1
      %v2536 = vmax.f32 %v2534, %v2535
      %v2537 = vsel %vm710, %v2331, -inf
      %v2538 = vrot.slane %v2537, 4
      %v2539 = vmax.f32 %v2537, %v2538
      %v2540 = vrot.slane %v2539, 2
      %v2541 = vmax.f32 %v2539, %v2540
      %v2542 = vrot.slane %v2541, 1
      %v2543 = vmax.f32 %v2541, %v2542
      %v2544 = vsel %vm710, %v2332, -inf
      %v2545 = vrot.slane %v2544, 4
      %v2546 = vmax.f32 %v2544, %v2545
      %v2547 = vrot.slane %v2546, 2
      %v2548 = vmax.f32 %v2546, %v2547
      %v2549 = vrot.slane %v2548, 1
      %v2550 = vmax.f32 %v2548, %v2549
      %v2551 = vsel %vm710, %v2333, -inf
      %v2552 = vrot.slane %v2551, 4
      %v2553 = vmax.f32 %v2551, %v2552
      %v2554 = vrot.slane %v2553, 2
      %v2555 = vmax.f32 %v2553, %v2554
      %v2556 = vrot.slane %v2555, 1
      %v2557 = vmax.f32 %v2555, %v2556
      %v2558 = vmul.f32 %v2340, %v2452
      %v2559 = vmul.f32 %v2347, %v2459
      %v2560 = vmul.f32 %v2354, %v2466
      %v2561 = vmul.f32 %v2361, %v2473
      %v2562 = vmul.f32 %v2368, %v2480
      %v2563 = vmul.f32 %v2375, %v2487
      %v2564 = vmul.f32 %v2382, %v2494
      %v2565 = vmul.f32 %v2389, %v2501
      %v2566 = vmul.f32 %v2396, %v2508
      %v2567 = vmul.f32 %v2403, %v2515
      %v2568 = vmul.f32 %v2410, %v2522
      %v2569 = vmul.f32 %v2417, %v2529
      %v2570 = vmul.f32 %v2424, %v2536
      %v2571 = vmul.f32 %v2431, %v2543
      %v2572 = vmul.f32 %v2438, %v2550
      %v2573 = vmul.f32 %v2445, %v2557
      %v2590 = vsel %vm1432, %v2559, %v2558
      %v2591 = vsel %vm1434, %v2560, %v2590
      %v2592 = vsel %vm1436, %v2561, %v2591
      %v2593 = vsel %vm1438, %v2562, %v2592
      %v2594 = vsel %vm1440, %v2563, %v2593
      %v2595 = vsel %vm1442, %v2564, %v2594
      %v2596 = vsel %vm1444, %v2565, %v2595
      %v2597 = vsel %vm1432, %v2567, %v2566
      %v2598 = vsel %vm1434, %v2568, %v2597
      %v2599 = vsel %vm1436, %v2569, %v2598
      %v2600 = vsel %vm1438, %v2570, %v2599
      %v2601 = vsel %vm1440, %v2571, %v2600
      %v2602 = vsel %vm1442, %v2572, %v2601
      %v2603 = vsel %vm1444, %v2573, %v2602
      %s2606 = scalar_lea.vmem %s297, 16
      %2607 = vst.msk [vmem:[%s2606] sm:$0xff] %vm710, %v2596
      %2608 = vst.msk [vmem:[%s2606 + $0x8] sm:$0xff] %vm710, %v2603
      %s2609 = smul.u32 4, %s17
      %p2610 = scmp.lt.s32.totalorder %s2609, 7
      %s2611 = scalar_select %p2610, %s2609, 7
      %s2612 = smul.addr %s2611, 8
      %s2613 = scalar_lea.vmem %s6, %s2612
      // Predicated region
      $region45: #{tpu_custom_call.1} parent=43 // pred_check
        %p2614 = pneg %p176
      $region46: #{tpu_custom_call.1} parent=43 // pred_check_branch
        %2616 = sbr.rel (%p2614) target = $region48
      $region47: #{tpu_custom_call.1} parent=43 // pred_region
        %s2617 = smul.u32 4, %s17
      $region48: #{tpu_custom_call.1} parent=43 // pred_fallthru
        _
    $region44: #{tpu_custom_call.1} parent=5 // pred_fallthru
      _
    %p2618 = scmp.le.s32.totalorder 2, %s12
    // Predicated region
    $region49: #{tpu_custom_call.1} parent=5 // pred_check
      %p2619 = pneg %p2618
    $region50: #{tpu_custom_call.1} parent=5 // pred_check_branch
      %2621 = sbr.rel (%p2619) target = $region52
    $region51: #{tpu_custom_call.1} parent=5 // pred_region
      %s2622 = ssub.s32 %s12, 2
      // Predicated region
      $region53: #{tpu_custom_call.1} parent=51 // pred_check
        %p2623 = pneg %p182
      $region54: #{tpu_custom_call.1} parent=51 // pred_check_branch
        %2625 = sbr.rel (%p2623) target = $region56
      $region55: #{tpu_custom_call.1} parent=51 // pred_region
        %s2626 = smul.u32 4, %s18
        %p2627 = scmp.lt.s32.totalorder %s2626, 7
        %s2628 = scalar_select %p2627, %s2626, 7
        %s2629 = smul.addr %s2628, 8
        %s2630 = scalar_lea.vmem %s6, %s2629
      $region56: #{tpu_custom_call.1} parent=51 // pred_fallthru
        _
    $region52: #{tpu_custom_call.1} parent=5 // pred_fallthru
      _
  $region6: #{tpu_custom_call.1} parent=0 // loop_footer
    %s16 = sadd.s32 1, %s12
  $region7: #{tpu_custom_call.1} parent=0 // loop_footer_branch
    %11 = sbr.rel target = $region3
  $region8: #{tpu_custom_call.1} parent=0 // loop_exit
    _

</llo_original>
